<compile_context>
chip_gen: v7x
topology: tpu7x:2x2x1
jax: 0.10.0
libtpu: 0.0.40
codegen_flags: <defaults>
</compile_context>

<pallas_src>
import numpy as np
import jax
import jax.numpy as jnp
from jax.experimental import pallas as pl
from jax.experimental.pallas import tpu as pltpu

HIDDEN_SIZE = 32
NUM_GRU_LAYERS = 1


def classifier_kernel(x_ref, h0_ref,
                      wih_r_ref, wih_z_ref, wih_n_ref,
                      whh_r_ref, whh_z_ref, whh_n_ref,
                      bgi_r_ref, bgi_z_ref, bgi_n_ref, bhn_ref,
                      wfc_ref, bfc_ref,
                      logits_ref, hout_ref):
    """x_ref: (S*Bp, E) time-major flattened embeddings
    h0_ref: (Bp, H)
    wih_{r,z,n}: (E, H)   whh_{r,z,n}: (H, H)
    bgi_{r,z}: (1, H) = b_ih + b_hh (folded);  bgi_n: (1, H) = b_in;  bhn: (1, H) = b_hn
    wfc: (H, C)  bfc: (1, C)
    outputs: logits (Bp, C), h_out (Bp, H)."""
    SB, E = x_ref.shape
    Bp, H = h0_ref.shape
    S = SB // Bp  # static at trace time

    # ---- Hoisted input projection: three lane-aligned MXU matmuls (no slicing). ----
    x = x_ref[...]                                                        # (S*Bp, E)
    gi_r = (jnp.dot(x, wih_r_ref[...], preferred_element_type=jnp.float32)
            + bgi_r_ref[...]).reshape(S, Bp, H)
    gi_z = (jnp.dot(x, wih_z_ref[...], preferred_element_type=jnp.float32)
            + bgi_z_ref[...]).reshape(S, Bp, H)
    gi_n = (jnp.dot(x, wih_n_ref[...], preferred_element_type=jnp.float32)
            + bgi_n_ref[...]).reshape(S, Bp, H)

    whh_r = whh_r_ref[...]
    whh_z = whh_z_ref[...]
    whh_n = whh_n_ref[...]
    bhn = bhn_ref[...]

    # ---- Serial recurrence: state and gi slabs live in vregs, statically unrolled. ----
    # TODO(synk): bound the unroll / spill gi to a consolidated VMEM buffer for large S.
    h = h0_ref[...]                                                       # (Bp, H)
    acc = jnp.zeros_like(h)
    for t in range(S):
        gh_r = jnp.dot(h, whh_r, preferred_element_type=jnp.float32)
        gh_z = jnp.dot(h, whh_z, preferred_element_type=jnp.float32)
        gh_n = jnp.dot(h, whh_n, preferred_element_type=jnp.float32) + bhn
        # PyTorch GRU gate order / semantics: r, z, n
        r = jax.nn.sigmoid(gi_r[t] + gh_r)
        z = jax.nn.sigmoid(gi_z[t] + gh_z)
        n = jnp.tanh(gi_n[t] + r * gh_n)
        h = (1.0 - z) * n + z * h
        acc = acc + h

    # ---- relu(mean over time) -> fully connected. ----
    pooled = jnp.maximum(acc * (1.0 / S), 0.0)                            # (Bp, H)
    logits_ref[...] = (jnp.dot(pooled, wfc_ref[...],
                               preferred_element_type=jnp.float32) + bfc_ref[...])
    hout_ref[...] = h


def prepare_params(emb_table, w_ih, w_hh, b_ih, b_hh, w_fc, b_fc):
    """One-time parameter prep (transposes, per-gate splits, bias folding).
    Run once at model init — not per forward call."""
    H = w_hh.shape[1]
    C = w_fc.shape[0]
    params = {
        "emb": jnp.asarray(emb_table),
        # per-gate input weights, transposed to (E, H)
        "wih_r": jnp.asarray(w_ih[0 * H:1 * H].T),
        "wih_z": jnp.asarray(w_ih[1 * H:2 * H].T),
        "wih_n": jnp.asarray(w_ih[2 * H:3 * H].T),
        # per-gate recurrent weights, transposed to (H, H)
        "whh_r": jnp.asarray(w_hh[0 * H:1 * H].T),
        "whh_z": jnp.asarray(w_hh[1 * H:2 * H].T),
        "whh_n": jnp.asarray(w_hh[2 * H:3 * H].T),
        # b_hh folded into the hoisted projection for r/z; b_hn stays with gh_n
        # because it is scaled by r inside the loop.
        "bgi_r": (b_ih[0 * H:1 * H] + b_hh[0 * H:1 * H]).reshape(1, H),
        "bgi_z": (b_ih[1 * H:2 * H] + b_hh[1 * H:2 * H]).reshape(1, H),
        "bgi_n": b_ih[2 * H:3 * H].reshape(1, H),
        "bhn": b_hh[2 * H:3 * H].reshape(1, H),
        "wfc": jnp.asarray(w_fc.T),                # (H, C)
        "bfc": b_fc.reshape(1, C),
    }
    return params


def classifier_forward(data, h, params):
    """data: (B, S) int32 token ids, h: (NUM_GRU_LAYERS, B, H).
    Returns (logits (B, C), h_out (NUM_GRU_LAYERS, B, H))."""
    B, S = data.shape
    E = params["emb"].shape[1]
    H = params["whh_r"].shape[0]
    C = params["wfc"].shape[1]

    # Pad batch to a full f32 sublane group (multiple of 8) so the in-kernel
    # (S*Bp, H) -> (S, Bp, H) reshape is layout-free; padded rows are sliced off.
    Bp = ((B + 7) // 8) * 8

    # Data-dependent glue only: gather embeddings directly in kernel layout.
    # (Transpose/pad the int ids — cheap — instead of the float embedding tensor.)
    ids = jnp.transpose(data, (1, 0))                        # (S, B)
    ids = jnp.pad(ids, ((0, 0), (0, Bp - B)))                # pad ids -> row 0 (finite)
    x = jnp.take(params["emb"], ids.reshape(S * Bp), axis=0)  # (S*Bp, E) time-major
    h0 = jnp.pad(h[0], ((0, Bp - B), (0, 0)))                # (Bp, H)

    vmem = pl.BlockSpec(memory_space=pltpu.MemorySpace.VMEM)
    logits, h_out = pl.pallas_call(
        classifier_kernel,
        out_shape=(jax.ShapeDtypeStruct((Bp, C), jnp.float32),
                   jax.ShapeDtypeStruct((Bp, H), jnp.float32)),
        in_specs=[vmem] * 14,
        out_specs=(vmem, vmem),
        compiler_params=pltpu.CompilerParams(vmem_limit_bytes=32 * 1024 * 1024),
    )(x, h0,
      params["wih_r"], params["wih_z"], params["wih_n"],
      params["whh_r"], params["whh_z"], params["whh_n"],
      params["bgi_r"], params["bgi_z"], params["bgi_n"], params["bhn"],
      params["wfc"], params["bfc"])
    return logits[:B], h_out[None, :B]                       # h_out: (1, B, H)


def reference_forward(data, h, emb_table, w_ih, w_hh, b_ih, b_hh, w_fc, b_fc):
    """Pure-JAX reference mirroring torch.nn.GRU semantics."""
    B, S = data.shape
    H = w_hh.shape[1]
    x = jnp.take(emb_table, data, axis=0)                    # (B, S, E)
    hh = h[0]
    outs = []
    for t in range(S):
        gi = x[:, t, :] @ w_ih.T + b_ih
        gh = hh @ w_hh.T + b_hh
        r = jax.nn.sigmoid(gi[:, :H] + gh[:, :H])
        z = jax.nn.sigmoid(gi[:, H:2 * H] + gh[:, H:2 * H])
        n = jnp.tanh(gi[:, 2 * H:] + r * gh[:, 2 * H:])
        hh = (1.0 - z) * n + z * hh
        outs.append(hh)
    seq = jnp.stack(outs, axis=1)                            # (B, S, H)
    pooled = jax.nn.relu(jnp.mean(seq, axis=-2))
    logits = pooled @ w_fc.T + b_fc
    return logits, hh[None]


if __name__ == "__main__":
    # Small, deterministic shapes consistent with the module's forward.
    B, S = 2, 8                 # batch, sequence length
    V, E = 50, 16               # vocab size, embedding dim
    H = HIDDEN_SIZE             # 32
    C = 4                       # num_classes

    key = jax.random.PRNGKey(0)
    k_emb, k_wih, k_whh, k_bih, k_bhh, k_wfc, k_bfc, k_data = jax.random.split(key, 8)

    emb_table = jax.random.normal(k_emb, (V, E), dtype=jnp.float32) * 0.1
    w_ih = jax.random.normal(k_wih, (3 * H, E), dtype=jnp.float32) * 0.1
    w_hh = jax.random.normal(k_whh, (3 * H, H), dtype=jnp.float32) * 0.1
    b_ih = jax.random.normal(k_bih, (3 * H,), dtype=jnp.float32) * 0.1
    b_hh = jax.random.normal(k_bhh, (3 * H,), dtype=jnp.float32) * 0.1
    w_fc = jax.random.normal(k_wfc, (C, H), dtype=jnp.float32) * 0.1
    b_fc = jax.random.normal(k_bfc, (C,), dtype=jnp.float32) * 0.1

    data = jax.random.randint(k_data, (B, S), 0, V, dtype=jnp.int32)
    h0 = jnp.zeros((NUM_GRU_LAYERS, B, H), dtype=jnp.float32)  # get_initial_hidden()

    # One-time parameter prep (hoisted out of the per-call path).
    params = prepare_params(emb_table, w_ih, w_hh, b_ih, b_hh, w_fc, b_fc)
    jax.block_until_ready(params)

    forward = jax.jit(classifier_forward)
    logits, h_out = forward(data, h0, params)
    jax.block_until_ready((logits, h_out))

    ref_logits, ref_h = reference_forward(data, h0, emb_table, w_ih, w_hh,
                                          b_ih, b_hh, w_fc, b_fc)
    np.testing.assert_allclose(np.asarray(logits), np.asarray(ref_logits),
                               rtol=1e-2, atol=1e-2)
    np.testing.assert_allclose(np.asarray(h_out), np.asarray(ref_h),
                               rtol=1e-2, atol=1e-2)

    print("KERNEL_OK")
</pallas_src>

<mosaic_0001>
module attributes {stable_mosaic.version = 11 : i64} {
  func.func @classifier_kernel(%arg0: memref<64x16xf32, #tpu.memory_space<vmem>>, %arg1: memref<8x32xf32, #tpu.memory_space<vmem>>, %arg2: memref<16x32xf32, #tpu.memory_space<vmem>>, %arg3: memref<16x32xf32, #tpu.memory_space<vmem>>, %arg4: memref<16x32xf32, #tpu.memory_space<vmem>>, %arg5: memref<32x32xf32, #tpu.memory_space<vmem>>, %arg6: memref<32x32xf32, #tpu.memory_space<vmem>>, %arg7: memref<32x32xf32, #tpu.memory_space<vmem>>, %arg8: memref<1x32xf32, #tpu.memory_space<vmem>>, %arg9: memref<1x32xf32, #tpu.memory_space<vmem>>, %arg10: memref<1x32xf32, #tpu.memory_space<vmem>>, %arg11: memref<1x32xf32, #tpu.memory_space<vmem>>, %arg12: memref<32x4xf32, #tpu.memory_space<vmem>>, %arg13: memref<1x4xf32, #tpu.memory_space<vmem>>, %arg14: memref<8x4xf32, #tpu.memory_space<vmem>>, %arg15: memref<8x32xf32, #tpu.memory_space<vmem>>) attributes {dimension_semantics = [], scalar_prefetch = 0 : i64, scratch_operands = 0 : i64, tpu.core_type = #tpu.core_type<tc>} {
    %c0 = arith.constant 0 : index
    %c0_0 = arith.constant 0 : index
    %0 = vector.load %arg0[%c0, %c0_0] : memref<64x16xf32, #tpu.memory_space<vmem>>, vector<64x16xf32>
    %c0_1 = arith.constant 0 : index
    %c0_2 = arith.constant 0 : index
    %1 = vector.load %arg2[%c0_1, %c0_2] : memref<16x32xf32, #tpu.memory_space<vmem>>, vector<16x32xf32>
    %cst = arith.constant dense<0.000000e+00> : vector<64x32xf32>
    %2 = tpu.matmul %0, %1, %cst {dimension_numbers = #tpu.dot_dimension_numbers<[1], [0], [0], [1], [0, 0, 1, 1], [], []>} : vector<64x16xf32>, vector<16x32xf32>, vector<64x32xf32> -> vector<64x32xf32>
    %c0_3 = arith.constant 0 : index
    %c0_4 = arith.constant 0 : index
    %3 = vector.load %arg8[%c0_3, %c0_4] : memref<1x32xf32, #tpu.memory_space<vmem>>, vector<1x32xf32>
    %4 = vector.broadcast %3 : vector<1x32xf32> to vector<64x32xf32>
    %5 = arith.addf %2, %4 : vector<64x32xf32>
    %6 = vector.shape_cast %5 : vector<64x32xf32> to vector<8x8x32xf32>
    %c0_5 = arith.constant 0 : index
    %c0_6 = arith.constant 0 : index
    %7 = vector.load %arg3[%c0_5, %c0_6] : memref<16x32xf32, #tpu.memory_space<vmem>>, vector<16x32xf32>
    %cst_7 = arith.constant dense<0.000000e+00> : vector<64x32xf32>
    %8 = tpu.matmul %0, %7, %cst_7 {dimension_numbers = #tpu.dot_dimension_numbers<[1], [0], [0], [1], [0, 0, 1, 1], [], []>} : vector<64x16xf32>, vector<16x32xf32>, vector<64x32xf32> -> vector<64x32xf32>
    %c0_8 = arith.constant 0 : index
    %c0_9 = arith.constant 0 : index
    %9 = vector.load %arg9[%c0_8, %c0_9] : memref<1x32xf32, #tpu.memory_space<vmem>>, vector<1x32xf32>
    %10 = vector.broadcast %9 : vector<1x32xf32> to vector<64x32xf32>
    %11 = arith.addf %8, %10 : vector<64x32xf32>
    %12 = vector.shape_cast %11 : vector<64x32xf32> to vector<8x8x32xf32>
    %c0_10 = arith.constant 0 : index
    %c0_11 = arith.constant 0 : index
    %13 = vector.load %arg4[%c0_10, %c0_11] : memref<16x32xf32, #tpu.memory_space<vmem>>, vector<16x32xf32>
    %cst_12 = arith.constant dense<0.000000e+00> : vector<64x32xf32>
    %14 = tpu.matmul %0, %13, %cst_12 {dimension_numbers = #tpu.dot_dimension_numbers<[1], [0], [0], [1], [0, 0, 1, 1], [], []>} : vector<64x16xf32>, vector<16x32xf32>, vector<64x32xf32> -> vector<64x32xf32>
    %c0_13 = arith.constant 0 : index
    %c0_14 = arith.constant 0 : index
    %15 = vector.load %arg10[%c0_13, %c0_14] : memref<1x32xf32, #tpu.memory_space<vmem>>, vector<1x32xf32>
    %16 = vector.broadcast %15 : vector<1x32xf32> to vector<64x32xf32>
    %17 = arith.addf %14, %16 : vector<64x32xf32>
    %18 = vector.shape_cast %17 : vector<64x32xf32> to vector<8x8x32xf32>
    %c0_15 = arith.constant 0 : index
    %c0_16 = arith.constant 0 : index
    %19 = vector.load %arg5[%c0_15, %c0_16] : memref<32x32xf32, #tpu.memory_space<vmem>>, vector<32x32xf32>
    %c0_17 = arith.constant 0 : index
    %c0_18 = arith.constant 0 : index
    %20 = vector.load %arg6[%c0_17, %c0_18] : memref<32x32xf32, #tpu.memory_space<vmem>>, vector<32x32xf32>
    %c0_19 = arith.constant 0 : index
    %c0_20 = arith.constant 0 : index
    %21 = vector.load %arg7[%c0_19, %c0_20] : memref<32x32xf32, #tpu.memory_space<vmem>>, vector<32x32xf32>
    %c0_21 = arith.constant 0 : index
    %c0_22 = arith.constant 0 : index
    %22 = vector.load %arg11[%c0_21, %c0_22] : memref<1x32xf32, #tpu.memory_space<vmem>>, vector<1x32xf32>
    %c0_23 = arith.constant 0 : index
    %c0_24 = arith.constant 0 : index
    %23 = vector.load %arg1[%c0_23, %c0_24] : memref<8x32xf32, #tpu.memory_space<vmem>>, vector<8x32xf32>
    %cst_25 = arith.constant 0.000000e+00 : f32
    %24 = vector.broadcast %cst_25 : f32 to vector<8x32xf32>
    %cst_26 = arith.constant dense<0.000000e+00> : vector<8x32xf32>
    %25 = tpu.matmul %23, %19, %cst_26 {dimension_numbers = #tpu.dot_dimension_numbers<[1], [0], [0], [1], [0, 0, 1, 1], [], []>} : vector<8x32xf32>, vector<32x32xf32>, vector<8x32xf32> -> vector<8x32xf32>
    %cst_27 = arith.constant dense<0.000000e+00> : vector<8x32xf32>
    %26 = tpu.matmul %23, %20, %cst_27 {dimension_numbers = #tpu.dot_dimension_numbers<[1], [0], [0], [1], [0, 0, 1, 1], [], []>} : vector<8x32xf32>, vector<32x32xf32>, vector<8x32xf32> -> vector<8x32xf32>
    %cst_28 = arith.constant dense<0.000000e+00> : vector<8x32xf32>
    %27 = tpu.matmul %23, %21, %cst_28 {dimension_numbers = #tpu.dot_dimension_numbers<[1], [0], [0], [1], [0, 0, 1, 1], [], []>} : vector<8x32xf32>, vector<32x32xf32>, vector<8x32xf32> -> vector<8x32xf32>
    %28 = vector.broadcast %22 : vector<1x32xf32> to vector<8x32xf32>
    %29 = arith.addf %27, %28 : vector<8x32xf32>
    %30 = vector.extract_strided_slice %6 {offsets = [0, 0, 0], sizes = [1, 8, 32], strides = [1, 1, 1]} : vector<8x8x32xf32> to vector<1x8x32xf32>
    %31 = vector.shape_cast %30 : vector<1x8x32xf32> to vector<8x32xf32>
    %32 = arith.addf %31, %25 : vector<8x32xf32>
    %33 = arith.negf %32 : vector<8x32xf32>
    %34 = math.exp %33 : vector<8x32xf32>
    %cst_29 = arith.constant 1.000000e+00 : f32
    %35 = vector.broadcast %cst_29 : f32 to vector<8x32xf32>
    %36 = arith.addf %35, %34 : vector<8x32xf32>
    %37 = arith.divf %35, %36 : vector<8x32xf32>
    %38 = vector.extract_strided_slice %12 {offsets = [0, 0, 0], sizes = [1, 8, 32], strides = [1, 1, 1]} : vector<8x8x32xf32> to vector<1x8x32xf32>
    %39 = vector.shape_cast %38 : vector<1x8x32xf32> to vector<8x32xf32>
    %40 = arith.addf %39, %26 : vector<8x32xf32>
    %41 = arith.negf %40 : vector<8x32xf32>
    %42 = math.exp %41 : vector<8x32xf32>
    %cst_30 = arith.constant 1.000000e+00 : f32
    %43 = vector.broadcast %cst_30 : f32 to vector<8x32xf32>
    %44 = arith.addf %43, %42 : vector<8x32xf32>
    %45 = arith.divf %43, %44 : vector<8x32xf32>
    %46 = vector.extract_strided_slice %18 {offsets = [0, 0, 0], sizes = [1, 8, 32], strides = [1, 1, 1]} : vector<8x8x32xf32> to vector<1x8x32xf32>
    %47 = vector.shape_cast %46 : vector<1x8x32xf32> to vector<8x32xf32>
    %48 = arith.mulf %37, %29 : vector<8x32xf32>
    %49 = arith.addf %47, %48 : vector<8x32xf32>
    %50 = math.tanh %49 : vector<8x32xf32>
    %cst_31 = arith.constant 1.000000e+00 : f32
    %51 = vector.broadcast %cst_31 : f32 to vector<8x32xf32>
    %52 = arith.subf %51, %45 : vector<8x32xf32>
    %53 = arith.mulf %52, %50 : vector<8x32xf32>
    %54 = arith.mulf %45, %23 : vector<8x32xf32>
    %55 = arith.addf %53, %54 : vector<8x32xf32>
    %56 = arith.addf %24, %55 : vector<8x32xf32>
    %cst_32 = arith.constant dense<0.000000e+00> : vector<8x32xf32>
    %57 = tpu.matmul %55, %19, %cst_32 {dimension_numbers = #tpu.dot_dimension_numbers<[1], [0], [0], [1], [0, 0, 1, 1], [], []>} : vector<8x32xf32>, vector<32x32xf32>, vector<8x32xf32> -> vector<8x32xf32>
    %cst_33 = arith.constant dense<0.000000e+00> : vector<8x32xf32>
    %58 = tpu.matmul %55, %20, %cst_33 {dimension_numbers = #tpu.dot_dimension_numbers<[1], [0], [0], [1], [0, 0, 1, 1], [], []>} : vector<8x32xf32>, vector<32x32xf32>, vector<8x32xf32> -> vector<8x32xf32>
    %cst_34 = arith.constant dense<0.000000e+00> : vector<8x32xf32>
    %59 = tpu.matmul %55, %21, %cst_34 {dimension_numbers = #tpu.dot_dimension_numbers<[1], [0], [0], [1], [0, 0, 1, 1], [], []>} : vector<8x32xf32>, vector<32x32xf32>, vector<8x32xf32> -> vector<8x32xf32>
    %60 = vector.broadcast %22 : vector<1x32xf32> to vector<8x32xf32>
    %61 = arith.addf %59, %60 : vector<8x32xf32>
    %62 = vector.extract_strided_slice %6 {offsets = [1, 0, 0], sizes = [1, 8, 32], strides = [1, 1, 1]} : vector<8x8x32xf32> to vector<1x8x32xf32>
    %63 = vector.shape_cast %62 : vector<1x8x32xf32> to vector<8x32xf32>
    %64 = arith.addf %63, %57 : vector<8x32xf32>
    %65 = arith.negf %64 : vector<8x32xf32>
    %66 = math.exp %65 : vector<8x32xf32>
    %cst_35 = arith.constant 1.000000e+00 : f32
    %67 = vector.broadcast %cst_35 : f32 to vector<8x32xf32>
    %68 = arith.addf %67, %66 : vector<8x32xf32>
    %69 = arith.divf %67, %68 : vector<8x32xf32>
    %70 = vector.extract_strided_slice %12 {offsets = [1, 0, 0], sizes = [1, 8, 32], strides = [1, 1, 1]} : vector<8x8x32xf32> to vector<1x8x32xf32>
    %71 = vector.shape_cast %70 : vector<1x8x32xf32> to vector<8x32xf32>
    %72 = arith.addf %71, %58 : vector<8x32xf32>
    %73 = arith.negf %72 : vector<8x32xf32>
    %74 = math.exp %73 : vector<8x32xf32>
    %cst_36 = arith.constant 1.000000e+00 : f32
    %75 = vector.broadcast %cst_36 : f32 to vector<8x32xf32>
    %76 = arith.addf %75, %74 : vector<8x32xf32>
    %77 = arith.divf %75, %76 : vector<8x32xf32>
    %78 = vector.extract_strided_slice %18 {offsets = [1, 0, 0], sizes = [1, 8, 32], strides = [1, 1, 1]} : vector<8x8x32xf32> to vector<1x8x32xf32>
    %79 = vector.shape_cast %78 : vector<1x8x32xf32> to vector<8x32xf32>
    %80 = arith.mulf %69, %61 : vector<8x32xf32>
    %81 = arith.addf %79, %80 : vector<8x32xf32>
    %82 = math.tanh %81 : vector<8x32xf32>
    %cst_37 = arith.constant 1.000000e+00 : f32
    %83 = vector.broadcast %cst_37 : f32 to vector<8x32xf32>
    %84 = arith.subf %83, %77 : vector<8x32xf32>
    %85 = arith.mulf %84, %82 : vector<8x32xf32>
    %86 = arith.mulf %77, %55 : vector<8x32xf32>
    %87 = arith.addf %85, %86 : vector<8x32xf32>
    %88 = arith.addf %56, %87 : vector<8x32xf32>
    %cst_38 = arith.constant dense<0.000000e+00> : vector<8x32xf32>
    %89 = tpu.matmul %87, %19, %cst_38 {dimension_numbers = #tpu.dot_dimension_numbers<[1], [0], [0], [1], [0, 0, 1, 1], [], []>} : vector<8x32xf32>, vector<32x32xf32>, vector<8x32xf32> -> vector<8x32xf32>
    %cst_39 = arith.constant dense<0.000000e+00> : vector<8x32xf32>
    %90 = tpu.matmul %87, %20, %cst_39 {dimension_numbers = #tpu.dot_dimension_numbers<[1], [0], [0], [1], [0, 0, 1, 1], [], []>} : vector<8x32xf32>, vector<32x32xf32>, vector<8x32xf32> -> vector<8x32xf32>
    %cst_40 = arith.constant dense<0.000000e+00> : vector<8x32xf32>
    %91 = tpu.matmul %87, %21, %cst_40 {dimension_numbers = #tpu.dot_dimension_numbers<[1], [0], [0], [1], [0, 0, 1, 1], [], []>} : vector<8x32xf32>, vector<32x32xf32>, vector<8x32xf32> -> vector<8x32xf32>
    %92 = vector.broadcast %22 : vector<1x32xf32> to vector<8x32xf32>
    %93 = arith.addf %91, %92 : vector<8x32xf32>
    %94 = vector.extract_strided_slice %6 {offsets = [2, 0, 0], sizes = [1, 8, 32], strides = [1, 1, 1]} : vector<8x8x32xf32> to vector<1x8x32xf32>
    %95 = vector.shape_cast %94 : vector<1x8x32xf32> to vector<8x32xf32>
    %96 = arith.addf %95, %89 : vector<8x32xf32>
    %97 = arith.negf %96 : vector<8x32xf32>
    %98 = math.exp %97 : vector<8x32xf32>
    %cst_41 = arith.constant 1.000000e+00 : f32
    %99 = vector.broadcast %cst_41 : f32 to vector<8x32xf32>
    %100 = arith.addf %99, %98 : vector<8x32xf32>
    %101 = arith.divf %99, %100 : vector<8x32xf32>
    %102 = vector.extract_strided_slice %12 {offsets = [2, 0, 0], sizes = [1, 8, 32], strides = [1, 1, 1]} : vector<8x8x32xf32> to vector<1x8x32xf32>
    %103 = vector.shape_cast %102 : vector<1x8x32xf32> to vector<8x32xf32>
    %104 = arith.addf %103, %90 : vector<8x32xf32>
    %105 = arith.negf %104 : vector<8x32xf32>
    %106 = math.exp %105 : vector<8x32xf32>
    %cst_42 = arith.constant 1.000000e+00 : f32
    %107 = vector.broadcast %cst_42 : f32 to vector<8x32xf32>
    %108 = arith.addf %107, %106 : vector<8x32xf32>
    %109 = arith.divf %107, %108 : vector<8x32xf32>
    %110 = vector.extract_strided_slice %18 {offsets = [2, 0, 0], sizes = [1, 8, 32], strides = [1, 1, 1]} : vector<8x8x32xf32> to vector<1x8x32xf32>
    %111 = vector.shape_cast %110 : vector<1x8x32xf32> to vector<8x32xf32>
    %112 = arith.mulf %101, %93 : vector<8x32xf32>
    %113 = arith.addf %111, %112 : vector<8x32xf32>
    %114 = math.tanh %113 : vector<8x32xf32>
    %cst_43 = arith.constant 1.000000e+00 : f32
    %115 = vector.broadcast %cst_43 : f32 to vector<8x32xf32>
    %116 = arith.subf %115, %109 : vector<8x32xf32>
    %117 = arith.mulf %116, %114 : vector<8x32xf32>
    %118 = arith.mulf %109, %87 : vector<8x32xf32>
    %119 = arith.addf %117, %118 : vector<8x32xf32>
    %120 = arith.addf %88, %119 : vector<8x32xf32>
    %cst_44 = arith.constant dense<0.000000e+00> : vector<8x32xf32>
    %121 = tpu.matmul %119, %19, %cst_44 {dimension_numbers = #tpu.dot_dimension_numbers<[1], [0], [0], [1], [0, 0, 1, 1], [], []>} : vector<8x32xf32>, vector<32x32xf32>, vector<8x32xf32> -> vector<8x32xf32>
    %cst_45 = arith.constant dense<0.000000e+00> : vector<8x32xf32>
    %122 = tpu.matmul %119, %20, %cst_45 {dimension_numbers = #tpu.dot_dimension_numbers<[1], [0], [0], [1], [0, 0, 1, 1], [], []>} : vector<8x32xf32>, vector<32x32xf32>, vector<8x32xf32> -> vector<8x32xf32>
    %cst_46 = arith.constant dense<0.000000e+00> : vector<8x32xf32>
    %123 = tpu.matmul %119, %21, %cst_46 {dimension_numbers = #tpu.dot_dimension_numbers<[1], [0], [0], [1], [0, 0, 1, 1], [], []>} : vector<8x32xf32>, vector<32x32xf32>, vector<8x32xf32> -> vector<8x32xf32>
    %124 = vector.broadcast %22 : vector<1x32xf32> to vector<8x32xf32>
    %125 = arith.addf %123, %124 : vector<8x32xf32>
    %126 = vector.extract_strided_slice %6 {offsets = [3, 0, 0], sizes = [1, 8, 32], strides = [1, 1, 1]} : vector<8x8x32xf32> to vector<1x8x32xf32>
    %127 = vector.shape_cast %126 : vector<1x8x32xf32> to vector<8x32xf32>
    %128 = arith.addf %127, %121 : vector<8x32xf32>
    %129 = arith.negf %128 : vector<8x32xf32>
    %130 = math.exp %129 : vector<8x32xf32>
    %cst_47 = arith.constant 1.000000e+00 : f32
    %131 = vector.broadcast %cst_47 : f32 to vector<8x32xf32>
    %132 = arith.addf %131, %130 : vector<8x32xf32>
    %133 = arith.divf %131, %132 : vector<8x32xf32>
    %134 = vector.extract_strided_slice %12 {offsets = [3, 0, 0], sizes = [1, 8, 32], strides = [1, 1, 1]} : vector<8x8x32xf32> to vector<1x8x32xf32>
    %135 = vector.shape_cast %134 : vector<1x8x32xf32> to vector<8x32xf32>
    %136 = arith.addf %135, %122 : vector<8x32xf32>
    %137 = arith.negf %136 : vector<8x32xf32>
    %138 = math.exp %137 : vector<8x32xf32>
    %cst_48 = arith.constant 1.000000e+00 : f32
    %139 = vector.broadcast %cst_48 : f32 to vector<8x32xf32>
    %140 = arith.addf %139, %138 : vector<8x32xf32>
    %141 = arith.divf %139, %140 : vector<8x32xf32>
    %142 = vector.extract_strided_slice %18 {offsets = [3, 0, 0], sizes = [1, 8, 32], strides = [1, 1, 1]} : vector<8x8x32xf32> to vector<1x8x32xf32>
    %143 = vector.shape_cast %142 : vector<1x8x32xf32> to vector<8x32xf32>
    %144 = arith.mulf %133, %125 : vector<8x32xf32>
    %145 = arith.addf %143, %144 : vector<8x32xf32>
    %146 = math.tanh %145 : vector<8x32xf32>
    %cst_49 = arith.constant 1.000000e+00 : f32
    %147 = vector.broadcast %cst_49 : f32 to vector<8x32xf32>
    %148 = arith.subf %147, %141 : vector<8x32xf32>
    %149 = arith.mulf %148, %146 : vector<8x32xf32>
    %150 = arith.mulf %141, %119 : vector<8x32xf32>
    %151 = arith.addf %149, %150 : vector<8x32xf32>
    %152 = arith.addf %120, %151 : vector<8x32xf32>
    %cst_50 = arith.constant dense<0.000000e+00> : vector<8x32xf32>
    %153 = tpu.matmul %151, %19, %cst_50 {dimension_numbers = #tpu.dot_dimension_numbers<[1], [0], [0], [1], [0, 0, 1, 1], [], []>} : vector<8x32xf32>, vector<32x32xf32>, vector<8x32xf32> -> vector<8x32xf32>
    %cst_51 = arith.constant dense<0.000000e+00> : vector<8x32xf32>
    %154 = tpu.matmul %151, %20, %cst_51 {dimension_numbers = #tpu.dot_dimension_numbers<[1], [0], [0], [1], [0, 0, 1, 1], [], []>} : vector<8x32xf32>, vector<32x32xf32>, vector<8x32xf32> -> vector<8x32xf32>
    %cst_52 = arith.constant dense<0.000000e+00> : vector<8x32xf32>
    %155 = tpu.matmul %151, %21, %cst_52 {dimension_numbers = #tpu.dot_dimension_numbers<[1], [0], [0], [1], [0, 0, 1, 1], [], []>} : vector<8x32xf32>, vector<32x32xf32>, vector<8x32xf32> -> vector<8x32xf32>
    %156 = vector.broadcast %22 : vector<1x32xf32> to vector<8x32xf32>
    %157 = arith.addf %155, %156 : vector<8x32xf32>
    %158 = vector.extract_strided_slice %6 {offsets = [4, 0, 0], sizes = [1, 8, 32], strides = [1, 1, 1]} : vector<8x8x32xf32> to vector<1x8x32xf32>
    %159 = vector.shape_cast %158 : vector<1x8x32xf32> to vector<8x32xf32>
    %160 = arith.addf %159, %153 : vector<8x32xf32>
    %161 = arith.negf %160 : vector<8x32xf32>
    %162 = math.exp %161 : vector<8x32xf32>
    %cst_53 = arith.constant 1.000000e+00 : f32
    %163 = vector.broadcast %cst_53 : f32 to vector<8x32xf32>
    %164 = arith.addf %163, %162 : vector<8x32xf32>
    %165 = arith.divf %163, %164 : vector<8x32xf32>
    %166 = vector.extract_strided_slice %12 {offsets = [4, 0, 0], sizes = [1, 8, 32], strides = [1, 1, 1]} : vector<8x8x32xf32> to vector<1x8x32xf32>
    %167 = vector.shape_cast %166 : vector<1x8x32xf32> to vector<8x32xf32>
    %168 = arith.addf %167, %154 : vector<8x32xf32>
    %169 = arith.negf %168 : vector<8x32xf32>
    %170 = math.exp %169 : vector<8x32xf32>
    %cst_54 = arith.constant 1.000000e+00 : f32
    %171 = vector.broadcast %cst_54 : f32 to vector<8x32xf32>
    %172 = arith.addf %171, %170 : vector<8x32xf32>
    %173 = arith.divf %171, %172 : vector<8x32xf32>
    %174 = vector.extract_strided_slice %18 {offsets = [4, 0, 0], sizes = [1, 8, 32], strides = [1, 1, 1]} : vector<8x8x32xf32> to vector<1x8x32xf32>
    %175 = vector.shape_cast %174 : vector<1x8x32xf32> to vector<8x32xf32>
    %176 = arith.mulf %165, %157 : vector<8x32xf32>
    %177 = arith.addf %175, %176 : vector<8x32xf32>
    %178 = math.tanh %177 : vector<8x32xf32>
    %cst_55 = arith.constant 1.000000e+00 : f32
    %179 = vector.broadcast %cst_55 : f32 to vector<8x32xf32>
    %180 = arith.subf %179, %173 : vector<8x32xf32>
    %181 = arith.mulf %180, %178 : vector<8x32xf32>
    %182 = arith.mulf %173, %151 : vector<8x32xf32>
    %183 = arith.addf %181, %182 : vector<8x32xf32>
    %184 = arith.addf %152, %183 : vector<8x32xf32>
    %cst_56 = arith.constant dense<0.000000e+00> : vector<8x32xf32>
    %185 = tpu.matmul %183, %19, %cst_56 {dimension_numbers = #tpu.dot_dimension_numbers<[1], [0], [0], [1], [0, 0, 1, 1], [], []>} : vector<8x32xf32>, vector<32x32xf32>, vector<8x32xf32> -> vector<8x32xf32>
    %cst_57 = arith.constant dense<0.000000e+00> : vector<8x32xf32>
    %186 = tpu.matmul %183, %20, %cst_57 {dimension_numbers = #tpu.dot_dimension_numbers<[1], [0], [0], [1], [0, 0, 1, 1], [], []>} : vector<8x32xf32>, vector<32x32xf32>, vector<8x32xf32> -> vector<8x32xf32>
    %cst_58 = arith.constant dense<0.000000e+00> : vector<8x32xf32>
    %187 = tpu.matmul %183, %21, %cst_58 {dimension_numbers = #tpu.dot_dimension_numbers<[1], [0], [0], [1], [0, 0, 1, 1], [], []>} : vector<8x32xf32>, vector<32x32xf32>, vector<8x32xf32> -> vector<8x32xf32>
    %188 = vector.broadcast %22 : vector<1x32xf32> to vector<8x32xf32>
    %189 = arith.addf %187, %188 : vector<8x32xf32>
    %190 = vector.extract_strided_slice %6 {offsets = [5, 0, 0], sizes = [1, 8, 32], strides = [1, 1, 1]} : vector<8x8x32xf32> to vector<1x8x32xf32>
    %191 = vector.shape_cast %190 : vector<1x8x32xf32> to vector<8x32xf32>
    %192 = arith.addf %191, %185 : vector<8x32xf32>
    %193 = arith.negf %192 : vector<8x32xf32>
    %194 = math.exp %193 : vector<8x32xf32>
    %cst_59 = arith.constant 1.000000e+00 : f32
    %195 = vector.broadcast %cst_59 : f32 to vector<8x32xf32>
    %196 = arith.addf %195, %194 : vector<8x32xf32>
    %197 = arith.divf %195, %196 : vector<8x32xf32>
    %198 = vector.extract_strided_slice %12 {offsets = [5, 0, 0], sizes = [1, 8, 32], strides = [1, 1, 1]} : vector<8x8x32xf32> to vector<1x8x32xf32>
    %199 = vector.shape_cast %198 : vector<1x8x32xf32> to vector<8x32xf32>
    %200 = arith.addf %199, %186 : vector<8x32xf32>
    %201 = arith.negf %200 : vector<8x32xf32>
    %202 = math.exp %201 : vector<8x32xf32>
    %cst_60 = arith.constant 1.000000e+00 : f32
    %203 = vector.broadcast %cst_60 : f32 to vector<8x32xf32>
    %204 = arith.addf %203, %202 : vector<8x32xf32>
    %205 = arith.divf %203, %204 : vector<8x32xf32>
    %206 = vector.extract_strided_slice %18 {offsets = [5, 0, 0], sizes = [1, 8, 32], strides = [1, 1, 1]} : vector<8x8x32xf32> to vector<1x8x32xf32>
    %207 = vector.shape_cast %206 : vector<1x8x32xf32> to vector<8x32xf32>
    %208 = arith.mulf %197, %189 : vector<8x32xf32>
    %209 = arith.addf %207, %208 : vector<8x32xf32>
    %210 = math.tanh %209 : vector<8x32xf32>
    %cst_61 = arith.constant 1.000000e+00 : f32
    %211 = vector.broadcast %cst_61 : f32 to vector<8x32xf32>
    %212 = arith.subf %211, %205 : vector<8x32xf32>
    %213 = arith.mulf %212, %210 : vector<8x32xf32>
    %214 = arith.mulf %205, %183 : vector<8x32xf32>
    %215 = arith.addf %213, %214 : vector<8x32xf32>
    %216 = arith.addf %184, %215 : vector<8x32xf32>
    %cst_62 = arith.constant dense<0.000000e+00> : vector<8x32xf32>
    %217 = tpu.matmul %215, %19, %cst_62 {dimension_numbers = #tpu.dot_dimension_numbers<[1], [0], [0], [1], [0, 0, 1, 1], [], []>} : vector<8x32xf32>, vector<32x32xf32>, vector<8x32xf32> -> vector<8x32xf32>
    %cst_63 = arith.constant dense<0.000000e+00> : vector<8x32xf32>
    %218 = tpu.matmul %215, %20, %cst_63 {dimension_numbers = #tpu.dot_dimension_numbers<[1], [0], [0], [1], [0, 0, 1, 1], [], []>} : vector<8x32xf32>, vector<32x32xf32>, vector<8x32xf32> -> vector<8x32xf32>
    %cst_64 = arith.constant dense<0.000000e+00> : vector<8x32xf32>
    %219 = tpu.matmul %215, %21, %cst_64 {dimension_numbers = #tpu.dot_dimension_numbers<[1], [0], [0], [1], [0, 0, 1, 1], [], []>} : vector<8x32xf32>, vector<32x32xf32>, vector<8x32xf32> -> vector<8x32xf32>
    %220 = vector.broadcast %22 : vector<1x32xf32> to vector<8x32xf32>
    %221 = arith.addf %219, %220 : vector<8x32xf32>
    %222 = vector.extract_strided_slice %6 {offsets = [6, 0, 0], sizes = [1, 8, 32], strides = [1, 1, 1]} : vector<8x8x32xf32> to vector<1x8x32xf32>
    %223 = vector.shape_cast %222 : vector<1x8x32xf32> to vector<8x32xf32>
    %224 = arith.addf %223, %217 : vector<8x32xf32>
    %225 = arith.negf %224 : vector<8x32xf32>
    %226 = math.exp %225 : vector<8x32xf32>
    %cst_65 = arith.constant 1.000000e+00 : f32
    %227 = vector.broadcast %cst_65 : f32 to vector<8x32xf32>
    %228 = arith.addf %227, %226 : vector<8x32xf32>
    %229 = arith.divf %227, %228 : vector<8x32xf32>
    %230 = vector.extract_strided_slice %12 {offsets = [6, 0, 0], sizes = [1, 8, 32], strides = [1, 1, 1]} : vector<8x8x32xf32> to vector<1x8x32xf32>
    %231 = vector.shape_cast %230 : vector<1x8x32xf32> to vector<8x32xf32>
    %232 = arith.addf %231, %218 : vector<8x32xf32>
    %233 = arith.negf %232 : vector<8x32xf32>
    %234 = math.exp %233 : vector<8x32xf32>
    %cst_66 = arith.constant 1.000000e+00 : f32
    %235 = vector.broadcast %cst_66 : f32 to vector<8x32xf32>
    %236 = arith.addf %235, %234 : vector<8x32xf32>
    %237 = arith.divf %235, %236 : vector<8x32xf32>
    %238 = vector.extract_strided_slice %18 {offsets = [6, 0, 0], sizes = [1, 8, 32], strides = [1, 1, 1]} : vector<8x8x32xf32> to vector<1x8x32xf32>
    %239 = vector.shape_cast %238 : vector<1x8x32xf32> to vector<8x32xf32>
    %240 = arith.mulf %229, %221 : vector<8x32xf32>
    %241 = arith.addf %239, %240 : vector<8x32xf32>
    %242 = math.tanh %241 : vector<8x32xf32>
    %cst_67 = arith.constant 1.000000e+00 : f32
    %243 = vector.broadcast %cst_67 : f32 to vector<8x32xf32>
    %244 = arith.subf %243, %237 : vector<8x32xf32>
    %245 = arith.mulf %244, %242 : vector<8x32xf32>
    %246 = arith.mulf %237, %215 : vector<8x32xf32>
    %247 = arith.addf %245, %246 : vector<8x32xf32>
    %248 = arith.addf %216, %247 : vector<8x32xf32>
    %cst_68 = arith.constant dense<0.000000e+00> : vector<8x32xf32>
    %249 = tpu.matmul %247, %19, %cst_68 {dimension_numbers = #tpu.dot_dimension_numbers<[1], [0], [0], [1], [0, 0, 1, 1], [], []>} : vector<8x32xf32>, vector<32x32xf32>, vector<8x32xf32> -> vector<8x32xf32>
    %cst_69 = arith.constant dense<0.000000e+00> : vector<8x32xf32>
    %250 = tpu.matmul %247, %20, %cst_69 {dimension_numbers = #tpu.dot_dimension_numbers<[1], [0], [0], [1], [0, 0, 1, 1], [], []>} : vector<8x32xf32>, vector<32x32xf32>, vector<8x32xf32> -> vector<8x32xf32>
    %cst_70 = arith.constant dense<0.000000e+00> : vector<8x32xf32>
    %251 = tpu.matmul %247, %21, %cst_70 {dimension_numbers = #tpu.dot_dimension_numbers<[1], [0], [0], [1], [0, 0, 1, 1], [], []>} : vector<8x32xf32>, vector<32x32xf32>, vector<8x32xf32> -> vector<8x32xf32>
    %252 = vector.broadcast %22 : vector<1x32xf32> to vector<8x32xf32>
    %253 = arith.addf %251, %252 : vector<8x32xf32>
    %254 = vector.extract_strided_slice %6 {offsets = [7, 0, 0], sizes = [1, 8, 32], strides = [1, 1, 1]} : vector<8x8x32xf32> to vector<1x8x32xf32>
    %255 = vector.shape_cast %254 : vector<1x8x32xf32> to vector<8x32xf32>
    %256 = arith.addf %255, %249 : vector<8x32xf32>
    %257 = arith.negf %256 : vector<8x32xf32>
    %258 = math.exp %257 : vector<8x32xf32>
    %cst_71 = arith.constant 1.000000e+00 : f32
    %259 = vector.broadcast %cst_71 : f32 to vector<8x32xf32>
    %260 = arith.addf %259, %258 : vector<8x32xf32>
    %261 = arith.divf %259, %260 : vector<8x32xf32>
    %262 = vector.extract_strided_slice %12 {offsets = [7, 0, 0], sizes = [1, 8, 32], strides = [1, 1, 1]} : vector<8x8x32xf32> to vector<1x8x32xf32>
    %263 = vector.shape_cast %262 : vector<1x8x32xf32> to vector<8x32xf32>
    %264 = arith.addf %263, %250 : vector<8x32xf32>
    %265 = arith.negf %264 : vector<8x32xf32>
    %266 = math.exp %265 : vector<8x32xf32>
    %cst_72 = arith.constant 1.000000e+00 : f32
    %267 = vector.broadcast %cst_72 : f32 to vector<8x32xf32>
    %268 = arith.addf %267, %266 : vector<8x32xf32>
    %269 = arith.divf %267, %268 : vector<8x32xf32>
    %270 = vector.extract_strided_slice %18 {offsets = [7, 0, 0], sizes = [1, 8, 32], strides = [1, 1, 1]} : vector<8x8x32xf32> to vector<1x8x32xf32>
    %271 = vector.shape_cast %270 : vector<1x8x32xf32> to vector<8x32xf32>
    %272 = arith.mulf %261, %253 : vector<8x32xf32>
    %273 = arith.addf %271, %272 : vector<8x32xf32>
    %274 = math.tanh %273 : vector<8x32xf32>
    %cst_73 = arith.constant 1.000000e+00 : f32
    %275 = vector.broadcast %cst_73 : f32 to vector<8x32xf32>
    %276 = arith.subf %275, %269 : vector<8x32xf32>
    %277 = arith.mulf %276, %274 : vector<8x32xf32>
    %278 = arith.mulf %269, %247 : vector<8x32xf32>
    %279 = arith.addf %277, %278 : vector<8x32xf32>
    %280 = arith.addf %248, %279 : vector<8x32xf32>
    %cst_74 = arith.constant 1.250000e-01 : f32
    %281 = vector.broadcast %cst_74 : f32 to vector<8x32xf32>
    %282 = arith.mulf %280, %281 : vector<8x32xf32>
    %cst_75 = arith.constant 0.000000e+00 : f32
    %283 = vector.broadcast %cst_75 : f32 to vector<8x32xf32>
    %284 = arith.maximumf %282, %283 : vector<8x32xf32>
    %c0_76 = arith.constant 0 : index
    %c0_77 = arith.constant 0 : index
    %285 = vector.load %arg12[%c0_76, %c0_77] : memref<32x4xf32, #tpu.memory_space<vmem>>, vector<32x4xf32>
    %cst_78 = arith.constant dense<0.000000e+00> : vector<8x4xf32>
    %286 = tpu.matmul %284, %285, %cst_78 {dimension_numbers = #tpu.dot_dimension_numbers<[1], [0], [0], [1], [0, 0, 1, 1], [], []>} : vector<8x32xf32>, vector<32x4xf32>, vector<8x4xf32> -> vector<8x4xf32>
    %c0_79 = arith.constant 0 : index
    %c0_80 = arith.constant 0 : index
    %287 = vector.load %arg13[%c0_79, %c0_80] : memref<1x4xf32, #tpu.memory_space<vmem>>, vector<1x4xf32>
    %288 = vector.broadcast %287 : vector<1x4xf32> to vector<8x4xf32>
    %289 = arith.addf %286, %288 : vector<8x4xf32>
    %c0_81 = arith.constant 0 : index
    %c0_82 = arith.constant 0 : index
    %290 = vector.load %arg14[%c0_81, %c0_82] : memref<8x4xf32, #tpu.memory_space<vmem>>, vector<8x4xf32>
    tpu.vector_store %arg14[%c0_81, %c0_82], %289 {strides = array<i32>} : memref<8x4xf32, #tpu.memory_space<vmem>>, vector<8x4xf32>,
    %c0_83 = arith.constant 0 : index
    %c0_84 = arith.constant 0 : index
    %291 = vector.load %arg15[%c0_83, %c0_84] : memref<8x32xf32, #tpu.memory_space<vmem>>, vector<8x32xf32>
    tpu.vector_store %arg15[%c0_83, %c0_84], %279 {strides = array<i32>} : memref<8x32xf32, #tpu.memory_space<vmem>>, vector<8x32xf32>,
    return
  }
}

</mosaic_0001>

<llo_original>
// kernel: classifier_forward.1
$region0: #{classifier_forward.1}
  #allocation0 [shape = 'u32[]', space=smem, size = 0x4, offset = 0x4, fixed_abs, tag = 'smem constant byte address 0x4 - core index']
  #allocation1 [shape = 'u32[144,128]{1,0:T(1,128)}', space=vmem, size = 0x12000, scoped, tag = 'internal scratch']
  %s0 = inlined_call_operand.vmem [shape: f32[64,16], index: 0, kind: input, shape index: {}]
  %s1 = inlined_call_operand.vmem [shape: f32[8,32], index: 1, kind: input, shape index: {}]
  %s2 = inlined_call_operand.vmem [shape: f32[16,32], index: 2, kind: input, shape index: {}]
  %s3 = inlined_call_operand.vmem [shape: f32[16,32], index: 3, kind: input, shape index: {}]
  %s4 = inlined_call_operand.vmem [shape: f32[16,32], index: 4, kind: input, shape index: {}]
  %s5 = inlined_call_operand.vmem [shape: f32[32,32], index: 5, kind: input, shape index: {}]
  %s6 = inlined_call_operand.vmem [shape: f32[32,32], index: 6, kind: input, shape index: {}]
  %s7 = inlined_call_operand.vmem [shape: f32[32,32], index: 7, kind: input, shape index: {}]
  %s8 = inlined_call_operand.vmem [shape: f32[1,32], index: 8, kind: input, shape index: {}]
  %s9 = inlined_call_operand.vmem [shape: f32[1,32], index: 9, kind: input, shape index: {}]
  %s10 = inlined_call_operand.vmem [shape: f32[1,32], index: 10, kind: input, shape index: {}]
  %s11 = inlined_call_operand.vmem [shape: f32[1,32], index: 11, kind: input, shape index: {}]
  %s12 = inlined_call_operand.vmem [shape: f32[32,4], index: 12, kind: input, shape index: {}]
  %s13 = inlined_call_operand.vmem [shape: f32[1,4], index: 13, kind: input, shape index: {}]
  %s14 = inlined_call_operand.vmem [shape: f32[8,4], index: 14, kind: output, shape index: {0}]
  %s15 = inlined_call_operand.vmem [shape: f32[8,32], index: 15, kind: output, shape index: {1}]
  %16 = xla_tuple %s14, %s15
  %s17 = sld [smem:[#allocation0]]
  $region74: #{classifier_forward.1} parent=0
    _
  %s19 = ssub.s32 1, %s17
  %s20 = scalar_select 0, %s19, %s17
  // Predicated region
  $region2: #{classifier_forward.1} parent=0 // pred_check
    _
  $region3: #{classifier_forward.1} parent=0 // pred_check_branch
    %22 = sbr.rel (0) target = $region5
  $region4: #{classifier_forward.1} parent=0 // pred_region
    _
  $region5: #{classifier_forward.1} parent=0 // pred_fallthru
    _
  // Predicated region
  $region6: #{classifier_forward.1} parent=0 // pred_check
    _
  $region7: #{classifier_forward.1} parent=0 // pred_check_branch
    %24 = sbr.rel (0) target = $region9
  $region8: #{classifier_forward.1} parent=0 // pred_region
    _
  $region9: #{classifier_forward.1} parent=0 // pred_fallthru
    _
  // Predicated region
  $region10: #{classifier_forward.1} parent=0 // pred_check
    _
  $region11: #{classifier_forward.1} parent=0 // pred_check_branch
    %26 = sbr.rel (0) target = $region13
  $region12: #{classifier_forward.1} parent=0 // pred_region
    _
  $region13: #{classifier_forward.1} parent=0 // pred_fallthru
    _
  // Predicated region
  $region14: #{classifier_forward.1} parent=0 // pred_check
    _
  $region15: #{classifier_forward.1} parent=0 // pred_check_branch
    %28 = sbr.rel (0) target = $region17
  $region16: #{classifier_forward.1} parent=0 // pred_region
    _
  $region17: #{classifier_forward.1} parent=0 // pred_fallthru
    _
  // Predicated region
  $region18: #{classifier_forward.1} parent=0 // pred_check
    _
  $region19: #{classifier_forward.1} parent=0 // pred_check_branch
    %30 = sbr.rel (0) target = $region21
  $region20: #{classifier_forward.1} parent=0 // pred_region
    _
  $region21: #{classifier_forward.1} parent=0 // pred_fallthru
    _
  // Predicated region
  $region22: #{classifier_forward.1} parent=0 // pred_check
    _
  $region23: #{classifier_forward.1} parent=0 // pred_check_branch
    %32 = sbr.rel (0) target = $region25
  $region24: #{classifier_forward.1} parent=0 // pred_region
    _
  $region25: #{classifier_forward.1} parent=0 // pred_fallthru
    _
  // Predicated region
  $region26: #{classifier_forward.1} parent=0 // pred_check
    _
  $region27: #{classifier_forward.1} parent=0 // pred_check_branch
    %34 = sbr.rel (0) target = $region29
  $region28: #{classifier_forward.1} parent=0 // pred_region
    _
  $region29: #{classifier_forward.1} parent=0 // pred_fallthru
    _
  // Predicated region
  $region30: #{classifier_forward.1} parent=0 // pred_check
    _
  $region31: #{classifier_forward.1} parent=0 // pred_check_branch
    %36 = sbr.rel (0) target = $region33
  $region32: #{classifier_forward.1} parent=0 // pred_region
    _
  $region33: #{classifier_forward.1} parent=0 // pred_fallthru
    _
  // Predicated region
  $region34: #{classifier_forward.1} parent=0 // pred_check
    _
  $region35: #{classifier_forward.1} parent=0 // pred_check_branch
    %38 = sbr.rel (0) target = $region37
  $region36: #{classifier_forward.1} parent=0 // pred_region
    _
  $region37: #{classifier_forward.1} parent=0 // pred_fallthru
    _
  // Predicated region
  $region38: #{classifier_forward.1} parent=0 // pred_check
    _
  $region39: #{classifier_forward.1} parent=0 // pred_check_branch
    %40 = sbr.rel (0) target = $region41
  $region40: #{classifier_forward.1} parent=0 // pred_region
    _
  $region41: #{classifier_forward.1} parent=0 // pred_fallthru
    _
  // Predicated region
  $region42: #{classifier_forward.1} parent=0 // pred_check
    _
  $region43: #{classifier_forward.1} parent=0 // pred_check_branch
    %42 = sbr.rel (0) target = $region45
  $region44: #{classifier_forward.1} parent=0 // pred_region
    _
  $region45: #{classifier_forward.1} parent=0 // pred_fallthru
    _
  // Predicated region
  $region46: #{classifier_forward.1} parent=0 // pred_check
    _
  $region47: #{classifier_forward.1} parent=0 // pred_check_branch
    %44 = sbr.rel (0) target = $region49
  $region48: #{classifier_forward.1} parent=0 // pred_region
    _
  $region49: #{classifier_forward.1} parent=0 // pred_fallthru
    _
  // Predicated region
  $region50: #{classifier_forward.1} parent=0 // pred_check
    _
  $region51: #{classifier_forward.1} parent=0 // pred_check_branch
    %46 = sbr.rel (0) target = $region53
  $region52: #{classifier_forward.1} parent=0 // pred_region
    _
  $region53: #{classifier_forward.1} parent=0 // pred_fallthru
    _
  // Predicated region
  $region54: #{classifier_forward.1} parent=0 // pred_check
    _
  $region55: #{classifier_forward.1} parent=0 // pred_check_branch
    %48 = sbr.rel (0) target = $region57
  $region56: #{classifier_forward.1} parent=0 // pred_region
    _
  $region57: #{classifier_forward.1} parent=0 // pred_fallthru
    _
  %v49 = vld [vmem:[%s0] sm:$0xff]
  %v50 = vld [vmem:[%s0 + $0x8] sm:$0xff]
  %v51 = vld [vmem:[%s0 + $0x10] sm:$0xff]
  %v52 = vld [vmem:[%s0 + $0x18] sm:$0xff]
  %v53 = vld [vmem:[%s0 + $0x20] sm:$0xff]
  %v54 = vld [vmem:[%s0 + $0x28] sm:$0xff]
  %v55 = vld [vmem:[%s0 + $0x30] sm:$0xff]
  %v56 = vld [vmem:[%s0 + $0x38] sm:$0xff]
  %v57 = vld [vmem:[%s2] sm:$0xff]
  %v58 = vld [vmem:[%s2 + $0x8] sm:$0xff]
  %v59 = vld [vmem:[%s8] sm:$0x1]
  %v61 = vlaneseq
  %v62 = vshrl.u32 %v61, 7
  %v63 = vsub.s32 0, %v62
  %v64 = vrot.slane %v59, %v63
  %vm66 = vcmask 130048
  %v68 = vsel %vm66, %v49, 0
  %v71 = vsel %vm66, %v50, 0
  %v74 = vsel %vm66, %v51, 0
  %v77 = vsel %vm66, %v52, 0
  %v80 = vsel %vm66, %v53, 0
  %v83 = vsel %vm66, %v54, 0
  %v86 = vsel %vm66, %v55, 0
  %v89 = vsel %vm66, %v56, 0
  %91 = vmatprep.subr.mxu0 0.0
  %92 = vmatpush1.msra.mxu0 %v57
  %93 = vmatprep.subr.mxu0 0.0
  %94 = vmatpush1.msra.mxu0 %v58
  %95 = vmatprep.subr.mxu0 0.0
  %96 = vmatpush1.msra.mxu0 0.0
  %97 = vmatprep.subr.mxu0 0.0
  %98 = vmatpush1.msra.mxu0 0.0
  %99 = vmatprep.subr.mxu0 0.0
  %100 = vmatpush1.msra.mxu0 0.0
  %101 = vmatprep.subr.mxu0 0.0
  %102 = vmatpush1.msra.mxu0 0.0
  %103 = vmatprep.subr.mxu0 0.0
  %104 = vmatpush1.msra.mxu0 0.0
  %105 = vmatprep.subr.mxu0 0.0
  %106 = vmatpush1.msra.mxu0 0.0
  %107 = vmatprep.subr.mxu0 0.0
  %108 = vmatpush1.msra.mxu0 0.0
  %109 = vmatprep.subr.mxu0 0.0
  %110 = vmatpush1.msra.mxu0 0.0
  %111 = vmatprep.subr.mxu0 0.0
  %112 = vmatpush1.msra.mxu0 0.0
  %113 = vmatprep.subr.mxu0 0.0
  %114 = vmatpush1.msra.mxu0 0.0
  %115 = vmatprep.subr.mxu0 0.0
  %116 = vmatpush1.msra.mxu0 0.0
  %117 = vmatprep.subr.mxu0 0.0
  %118 = vmatpush1.msra.mxu0 0.0
  %119 = vmatprep.subr.mxu0 0.0
  %120 = vmatpush1.msra.mxu0 0.0
  %121 = vmatprep.subr.mxu0 0.0
  %122 = vmatpush1.msra.mxu0 0.0
  %123 = vmatprep.subr.mxu0 0.0
  %124 = vmatpush1.msra.mxu0 0.0
  %125 = vmatprep.subr.mxu0 0.0
  %126 = vmatpush1.msra.mxu0 0.0
  %127 = vmatprep.subr.mxu0 0.0
  %128 = vmatpush1.msra.mxu0 0.0
  %129 = vmatprep.subr.mxu0 0.0
  %130 = vmatpush1.msra.mxu0 0.0
  %131 = vmatprep.subr.mxu0 0.0
  %132 = vmatpush1.msra.mxu0 0.0
  %133 = vmatprep.subr.mxu0 0.0
  %134 = vmatpush1.msra.mxu0 0.0
  %135 = vmatprep.subr.mxu0 0.0
  %136 = vmatpush1.msra.mxu0 0.0
  %137 = vmatprep.subr.mxu0 0.0
  %138 = vmatpush1.msra.mxu0 0.0
  %139 = vmatprep.subr.mxu0 0.0
  %140 = vmatpush1.msra.mxu0 0.0
  %141 = vmatprep.subr.mxu0 0.0
  %142 = vmatpush1.msra.mxu0 0.0
  %143 = vmatprep.subr.mxu0 0.0
  %144 = vmatpush1.msra.mxu0 0.0
  %145 = vmatprep.subr.mxu0 0.0
  %146 = vmatpush1.msra.mxu0 0.0
  %147 = vmatprep.subr.mxu0 0.0
  %148 = vmatpush1.msra.mxu0 0.0
  %149 = vmatprep.subr.mxu0 0.0
  %150 = vmatpush1.msra.mxu0 0.0
  %151 = vmatprep.subr.mxu0 0.0
  %152 = vmatpush1.msra.mxu0 0.0
  %153 = vmatprep.subr.mxu0 0.0
  %154 = vmatpush1.msra.mxu0 0.0
  %155 = vmatprep.mubr.f32.mxu0 0.0
  %156 = vmatmul.mubr.f32.gmra.mrb[0].mxu0 %v68
  %v157 = vpop.f32.mrb[0].mxu0
  %v158 = vadd.f32 %v64, %v157
  %v159 = vpop.f32.mrb[0].mxu0
  %160 = vmatprep.mubr.f32.mxu0 0.0
  %161 = vmatmul.mubr.f32.gmra.mrb[0].mxu0 %v71
  %v162 = vpop.f32.mrb[0].mxu0
  %v163 = vadd.f32 %v64, %v162
  %v164 = vpop.f32.mrb[0].mxu0
  %165 = vmatprep.mubr.f32.mxu0 0.0
  %166 = vmatmul.mubr.f32.gmra.mrb[0].mxu0 %v74
  %v167 = vpop.f32.mrb[0].mxu0
  %v168 = vadd.f32 %v64, %v167
  %v169 = vpop.f32.mrb[0].mxu0
  %170 = vmatprep.mubr.f32.mxu0 0.0
  %171 = vmatmul.mubr.f32.gmra.mrb[0].mxu0 %v77
  %v172 = vpop.f32.mrb[0].mxu0
  %v173 = vadd.f32 %v64, %v172
  %v174 = vpop.f32.mrb[0].mxu0
  %175 = vmatprep.mubr.f32.mxu0 0.0
  %176 = vmatmul.mubr.f32.gmra.mrb[0].mxu0 %v80
  %v177 = vpop.f32.mrb[0].mxu0
  %v178 = vadd.f32 %v64, %v177
  %v179 = vpop.f32.mrb[0].mxu0
  %180 = vmatprep.mubr.f32.mxu0 0.0
  %181 = vmatmul.mubr.f32.gmra.mrb[0].mxu0 %v83
  %v182 = vpop.f32.mrb[0].mxu0
  %v183 = vadd.f32 %v64, %v182
  %v184 = vpop.f32.mrb[0].mxu0
  %185 = vmatprep.mubr.f32.mxu0 0.0
  %186 = vmatmul.mubr.f32.gmra.mrb[0].mxu0 %v86
  %v187 = vpop.f32.mrb[0].mxu0
  %v188 = vadd.f32 %v64, %v187
  %v189 = vpop.f32.mrb[0].mxu0
  %190 = vmatprep.mubr.f32.mxu0 0.0
  %191 = vmatmul.mubr.f32.gmra.mrb[0].mxu0 %v89
  %v192 = vpop.f32.mrb[0].mxu0
  %v193 = vadd.f32 %v64, %v192
  %v194 = vpop.f32.mrb[0].mxu0
  %195 = vdwg.mxu0
  %v196 = vld [vmem:[%s3] sm:$0xff]
  %v197 = vld [vmem:[%s3 + $0x8] sm:$0xff]
  %v198 = vld [vmem:[%s9] sm:$0x1]
  %v200 = vlaneseq
  %v201 = vshrl.u32 %v200, 7
  %v202 = vsub.s32 0, %v201
  %v203 = vrot.slane %v198, %v202
  %205 = vmatprep.subr.mxu0 0.0
  %206 = vmatpush1.msra.mxu0 %v196
  %207 = vmatprep.subr.mxu0 0.0
  %208 = vmatpush1.msra.mxu0 %v197
  %209 = vmatprep.subr.mxu0 0.0
  %210 = vmatpush1.msra.mxu0 0.0
  %211 = vmatprep.subr.mxu0 0.0
  %212 = vmatpush1.msra.mxu0 0.0
  %213 = vmatprep.subr.mxu0 0.0
  %214 = vmatpush1.msra.mxu0 0.0
  %215 = vmatprep.subr.mxu0 0.0
  %216 = vmatpush1.msra.mxu0 0.0
  %217 = vmatprep.subr.mxu0 0.0
  %218 = vmatpush1.msra.mxu0 0.0
  %219 = vmatprep.subr.mxu0 0.0
  %220 = vmatpush1.msra.mxu0 0.0
  %221 = vmatprep.subr.mxu0 0.0
  %222 = vmatpush1.msra.mxu0 0.0
  %223 = vmatprep.subr.mxu0 0.0
  %224 = vmatpush1.msra.mxu0 0.0
  %225 = vmatprep.subr.mxu0 0.0
  %226 = vmatpush1.msra.mxu0 0.0
  %227 = vmatprep.subr.mxu0 0.0
  %228 = vmatpush1.msra.mxu0 0.0
  %229 = vmatprep.subr.mxu0 0.0
  %230 = vmatpush1.msra.mxu0 0.0
  %231 = vmatprep.subr.mxu0 0.0
  %232 = vmatpush1.msra.mxu0 0.0
  %233 = vmatprep.subr.mxu0 0.0
  %234 = vmatpush1.msra.mxu0 0.0
  %235 = vmatprep.subr.mxu0 0.0
  %236 = vmatpush1.msra.mxu0 0.0
  %237 = vmatprep.subr.mxu0 0.0
  %238 = vmatpush1.msra.mxu0 0.0
  %239 = vmatprep.subr.mxu0 0.0
  %240 = vmatpush1.msra.mxu0 0.0
  %241 = vmatprep.subr.mxu0 0.0
  %242 = vmatpush1.msra.mxu0 0.0
  %243 = vmatprep.subr.mxu0 0.0
  %244 = vmatpush1.msra.mxu0 0.0
  %245 = vmatprep.subr.mxu0 0.0
  %246 = vmatpush1.msra.mxu0 0.0
  %247 = vmatprep.subr.mxu0 0.0
  %248 = vmatpush1.msra.mxu0 0.0
  %249 = vmatprep.subr.mxu0 0.0
  %250 = vmatpush1.msra.mxu0 0.0
  %251 = vmatprep.subr.mxu0 0.0
  %252 = vmatpush1.msra.mxu0 0.0
  %253 = vmatprep.subr.mxu0 0.0
  %254 = vmatpush1.msra.mxu0 0.0
  %255 = vmatprep.subr.mxu0 0.0
  %256 = vmatpush1.msra.mxu0 0.0
  %257 = vmatprep.subr.mxu0 0.0
  %258 = vmatpush1.msra.mxu0 0.0
  %259 = vmatprep.subr.mxu0 0.0
  %260 = vmatpush1.msra.mxu0 0.0
  %261 = vmatprep.subr.mxu0 0.0
  %262 = vmatpush1.msra.mxu0 0.0
  %263 = vmatprep.subr.mxu0 0.0
  %264 = vmatpush1.msra.mxu0 0.0
  %265 = vmatprep.subr.mxu0 0.0
  %266 = vmatpush1.msra.mxu0 0.0
  %267 = vmatprep.subr.mxu0 0.0
  %268 = vmatpush1.msra.mxu0 0.0
  %269 = vmatprep.mubr.f32.mxu0 0.0
  %270 = vmatmul.mubr.f32.gmra.mrb[0].mxu0 %v68
  %v271 = vpop.f32.mrb[0].mxu0
  %v272 = vadd.f32 %v203, %v271
  %v273 = vpop.f32.mrb[0].mxu0
  %274 = vmatprep.mubr.f32.mxu0 0.0
  %275 = vmatmul.mubr.f32.gmra.mrb[0].mxu0 %v71
  %v276 = vpop.f32.mrb[0].mxu0
  %v277 = vadd.f32 %v203, %v276
  %v278 = vpop.f32.mrb[0].mxu0
  %279 = vmatprep.mubr.f32.mxu0 0.0
  %280 = vmatmul.mubr.f32.gmra.mrb[0].mxu0 %v74
  %v281 = vpop.f32.mrb[0].mxu0
  %v282 = vadd.f32 %v203, %v281
  %v283 = vpop.f32.mrb[0].mxu0
  %284 = vmatprep.mubr.f32.mxu0 0.0
  %285 = vmatmul.mubr.f32.gmra.mrb[0].mxu0 %v77
  %v286 = vpop.f32.mrb[0].mxu0
  %v287 = vadd.f32 %v203, %v286
  %v288 = vpop.f32.mrb[0].mxu0
  %289 = vmatprep.mubr.f32.mxu0 0.0
  %290 = vmatmul.mubr.f32.gmra.mrb[0].mxu0 %v80
  %v291 = vpop.f32.mrb[0].mxu0
  %v292 = vadd.f32 %v203, %v291
  %v293 = vpop.f32.mrb[0].mxu0
  %294 = vmatprep.mubr.f32.mxu0 0.0
  %295 = vmatmul.mubr.f32.gmra.mrb[0].mxu0 %v83
  %v296 = vpop.f32.mrb[0].mxu0
  %v297 = vadd.f32 %v203, %v296
  %v298 = vpop.f32.mrb[0].mxu0
  %299 = vmatprep.mubr.f32.mxu0 0.0
  %300 = vmatmul.mubr.f32.gmra.mrb[0].mxu0 %v86
  %v301 = vpop.f32.mrb[0].mxu0
  %v302 = vadd.f32 %v203, %v301
  %v303 = vpop.f32.mrb[0].mxu0
  %304 = vmatprep.mubr.f32.mxu0 0.0
  %305 = vmatmul.mubr.f32.gmra.mrb[0].mxu0 %v89
  %v306 = vpop.f32.mrb[0].mxu0
  %v307 = vadd.f32 %v203, %v306
  %v308 = vpop.f32.mrb[0].mxu0
  %309 = vdwg.mxu0
  %v310 = vld [vmem:[%s4] sm:$0xff]
  %v311 = vld [vmem:[%s4 + $0x8] sm:$0xff]
  %v312 = vld [vmem:[%s10] sm:$0x1]
  %v314 = vlaneseq
  %v315 = vshrl.u32 %v314, 7
  %v316 = vsub.s32 0, %v315
  %v317 = vrot.slane %v312, %v316
  %319 = vmatprep.subr.mxu0 0.0
  %320 = vmatpush1.msra.mxu0 %v310
  %321 = vmatprep.subr.mxu0 0.0
  %322 = vmatpush1.msra.mxu0 %v311
  %323 = vmatprep.subr.mxu0 0.0
  %324 = vmatpush1.msra.mxu0 0.0
  %325 = vmatprep.subr.mxu0 0.0
  %326 = vmatpush1.msra.mxu0 0.0
  %327 = vmatprep.subr.mxu0 0.0
  %328 = vmatpush1.msra.mxu0 0.0
  %329 = vmatprep.subr.mxu0 0.0
  %330 = vmatpush1.msra.mxu0 0.0
  %331 = vmatprep.subr.mxu0 0.0
  %332 = vmatpush1.msra.mxu0 0.0
  %333 = vmatprep.subr.mxu0 0.0
  %334 = vmatpush1.msra.mxu0 0.0
  %335 = vmatprep.subr.mxu0 0.0
  %336 = vmatpush1.msra.mxu0 0.0
  %337 = vmatprep.subr.mxu0 0.0
  %338 = vmatpush1.msra.mxu0 0.0
  %339 = vmatprep.subr.mxu0 0.0
  %340 = vmatpush1.msra.mxu0 0.0
  %341 = vmatprep.subr.mxu0 0.0
  %342 = vmatpush1.msra.mxu0 0.0
  %343 = vmatprep.subr.mxu0 0.0
  %344 = vmatpush1.msra.mxu0 0.0
  %345 = vmatprep.subr.mxu0 0.0
  %346 = vmatpush1.msra.mxu0 0.0
  %347 = vmatprep.subr.mxu0 0.0
  %348 = vmatpush1.msra.mxu0 0.0
  %349 = vmatprep.subr.mxu0 0.0
  %350 = vmatpush1.msra.mxu0 0.0
  %351 = vmatprep.subr.mxu0 0.0
  %352 = vmatpush1.msra.mxu0 0.0
  %353 = vmatprep.subr.mxu0 0.0
  %354 = vmatpush1.msra.mxu0 0.0
  %355 = vmatprep.subr.mxu0 0.0
  %356 = vmatpush1.msra.mxu0 0.0
  %357 = vmatprep.subr.mxu0 0.0
  %358 = vmatpush1.msra.mxu0 0.0
  %359 = vmatprep.subr.mxu0 0.0
  %360 = vmatpush1.msra.mxu0 0.0
  %361 = vmatprep.subr.mxu0 0.0
  %362 = vmatpush1.msra.mxu0 0.0
  %363 = vmatprep.subr.mxu0 0.0
  %364 = vmatpush1.msra.mxu0 0.0
  %365 = vmatprep.subr.mxu0 0.0
  %366 = vmatpush1.msra.mxu0 0.0
  %367 = vmatprep.subr.mxu0 0.0
  %368 = vmatpush1.msra.mxu0 0.0
  %369 = vmatprep.subr.mxu0 0.0
  %370 = vmatpush1.msra.mxu0 0.0
  %371 = vmatprep.subr.mxu0 0.0
  %372 = vmatpush1.msra.mxu0 0.0
  %373 = vmatprep.subr.mxu0 0.0
  %374 = vmatpush1.msra.mxu0 0.0
  %375 = vmatprep.subr.mxu0 0.0
  %376 = vmatpush1.msra.mxu0 0.0
  %377 = vmatprep.subr.mxu0 0.0
  %378 = vmatpush1.msra.mxu0 0.0
  %379 = vmatprep.subr.mxu0 0.0
  %380 = vmatpush1.msra.mxu0 0.0
  %381 = vmatprep.subr.mxu0 0.0
  %382 = vmatpush1.msra.mxu0 0.0
  %383 = vmatprep.mubr.f32.mxu0 0.0
  %384 = vmatmul.mubr.f32.gmra.mrb[0].mxu0 %v68
  %v385 = vpop.f32.mrb[0].mxu0
  %v386 = vadd.f32 %v317, %v385
  %v387 = vpop.f32.mrb[0].mxu0
  %388 = vmatprep.mubr.f32.mxu0 0.0
  %389 = vmatmul.mubr.f32.gmra.mrb[0].mxu0 %v71
  %v390 = vpop.f32.mrb[0].mxu0
  %v391 = vadd.f32 %v317, %v390
  %v392 = vpop.f32.mrb[0].mxu0
  %393 = vmatprep.mubr.f32.mxu0 0.0
  %394 = vmatmul.mubr.f32.gmra.mrb[0].mxu0 %v74
  %v395 = vpop.f32.mrb[0].mxu0
  %v396 = vadd.f32 %v317, %v395
  %v397 = vpop.f32.mrb[0].mxu0
  %398 = vmatprep.mubr.f32.mxu0 0.0
  %399 = vmatmul.mubr.f32.gmra.mrb[0].mxu0 %v77
  %v400 = vpop.f32.mrb[0].mxu0
  %v401 = vadd.f32 %v317, %v400
  %v402 = vpop.f32.mrb[0].mxu0
  %403 = vmatprep.mubr.f32.mxu0 0.0
  %404 = vmatmul.mubr.f32.gmra.mrb[0].mxu0 %v80
  %v405 = vpop.f32.mrb[0].mxu0
  %v406 = vadd.f32 %v317, %v405
  %v407 = vpop.f32.mrb[0].mxu0
  %408 = vmatprep.mubr.f32.mxu0 0.0
  %409 = vmatmul.mubr.f32.gmra.mrb[0].mxu0 %v83
  %v410 = vpop.f32.mrb[0].mxu0
  %v411 = vadd.f32 %v317, %v410
  %v412 = vpop.f32.mrb[0].mxu0
  %413 = vmatprep.mubr.f32.mxu0 0.0
  %414 = vmatmul.mubr.f32.gmra.mrb[0].mxu0 %v86
  %v415 = vpop.f32.mrb[0].mxu0
  %v416 = vadd.f32 %v317, %v415
  %v417 = vpop.f32.mrb[0].mxu0
  %418 = vmatprep.mubr.f32.mxu0 0.0
  %419 = vmatmul.mubr.f32.gmra.mrb[0].mxu0 %v89
  %v420 = vpop.f32.mrb[0].mxu0
  %v421 = vadd.f32 %v317, %v420
  %v422 = vpop.f32.mrb[0].mxu0
  %423 = vdwg.mxu0
  %v424 = vld [vmem:[%s5] sm:$0xff]
  %v425 = vld [vmem:[%s5 + $0x8] sm:$0xff]
  %v426 = vld [vmem:[%s5 + $0x10] sm:$0xff]
  %v427 = vld [vmem:[%s5 + $0x18] sm:$0xff]
  %v428 = vld [vmem:[%s6] sm:$0xff]
  %v429 = vld [vmem:[%s6 + $0x8] sm:$0xff]
  %v430 = vld [vmem:[%s6 + $0x10] sm:$0xff]
  %v431 = vld [vmem:[%s6 + $0x18] sm:$0xff]
  %v432 = vld [vmem:[%s7] sm:$0xff]
  %v433 = vld [vmem:[%s7 + $0x8] sm:$0xff]
  %v434 = vld [vmem:[%s7 + $0x10] sm:$0xff]
  %v435 = vld [vmem:[%s7 + $0x18] sm:$0xff]
  %v436 = vld [vmem:[%s11] sm:$0x1]
  %v437 = vld [vmem:[%s1] sm:$0xff]
  %vm438 = vcmask 261120
  %v440 = vsel %vm438, %v437, 0
  %442 = vmatprep.subr.mxu0 0.0
  %443 = vmatpush1.msra.mxu0 %v424
  %444 = vmatprep.subr.mxu0 0.0
  %445 = vmatpush1.msra.mxu0 %v425
  %446 = vmatprep.subr.mxu0 0.0
  %447 = vmatpush1.msra.mxu0 %v426
  %448 = vmatprep.subr.mxu0 0.0
  %449 = vmatpush1.msra.mxu0 %v427
  %450 = vmatprep.subr.mxu0 0.0
  %451 = vmatpush1.msra.mxu0 0.0
  %452 = vmatprep.subr.mxu0 0.0
  %453 = vmatpush1.msra.mxu0 0.0
  %454 = vmatprep.subr.mxu0 0.0
  %455 = vmatpush1.msra.mxu0 0.0
  %456 = vmatprep.subr.mxu0 0.0
  %457 = vmatpush1.msra.mxu0 0.0
  %458 = vmatprep.subr.mxu0 0.0
  %459 = vmatpush1.msra.mxu0 0.0
  %460 = vmatprep.subr.mxu0 0.0
  %461 = vmatpush1.msra.mxu0 0.0
  %462 = vmatprep.subr.mxu0 0.0
  %463 = vmatpush1.msra.mxu0 0.0
  %464 = vmatprep.subr.mxu0 0.0
  %465 = vmatpush1.msra.mxu0 0.0
  %466 = vmatprep.subr.mxu0 0.0
  %467 = vmatpush1.msra.mxu0 0.0
  %468 = vmatprep.subr.mxu0 0.0
  %469 = vmatpush1.msra.mxu0 0.0
  %470 = vmatprep.subr.mxu0 0.0
  %471 = vmatpush1.msra.mxu0 0.0
  %472 = vmatprep.subr.mxu0 0.0
  %473 = vmatpush1.msra.mxu0 0.0
  %474 = vmatprep.subr.mxu0 0.0
  %475 = vmatpush1.msra.mxu0 0.0
  %476 = vmatprep.subr.mxu0 0.0
  %477 = vmatpush1.msra.mxu0 0.0
  %478 = vmatprep.subr.mxu0 0.0
  %479 = vmatpush1.msra.mxu0 0.0
  %480 = vmatprep.subr.mxu0 0.0
  %481 = vmatpush1.msra.mxu0 0.0
  %482 = vmatprep.subr.mxu0 0.0
  %483 = vmatpush1.msra.mxu0 0.0
  %484 = vmatprep.subr.mxu0 0.0
  %485 = vmatpush1.msra.mxu0 0.0
  %486 = vmatprep.subr.mxu0 0.0
  %487 = vmatpush1.msra.mxu0 0.0
  %488 = vmatprep.subr.mxu0 0.0
  %489 = vmatpush1.msra.mxu0 0.0
  %490 = vmatprep.subr.mxu0 0.0
  %491 = vmatpush1.msra.mxu0 0.0
  %492 = vmatprep.subr.mxu0 0.0
  %493 = vmatpush1.msra.mxu0 0.0
  %494 = vmatprep.subr.mxu0 0.0
  %495 = vmatpush1.msra.mxu0 0.0
  %496 = vmatprep.subr.mxu0 0.0
  %497 = vmatpush1.msra.mxu0 0.0
  %498 = vmatprep.subr.mxu0 0.0
  %499 = vmatpush1.msra.mxu0 0.0
  %500 = vmatprep.subr.mxu0 0.0
  %501 = vmatpush1.msra.mxu0 0.0
  %502 = vmatprep.subr.mxu0 0.0
  %503 = vmatpush1.msra.mxu0 0.0
  %504 = vmatprep.subr.mxu0 0.0
  %505 = vmatpush1.msra.mxu0 0.0
  %506 = vmatprep.mubr.f32.mxu0 0.0
  %507 = vmatmul.mubr.f32.gmra.mrb[0].mxu0 %v440
  %v508 = vpop.f32.mrb[0].mxu0
  %v509 = vadd.f32 0.0, %v508
  %v510 = vpop.f32.mrb[0].mxu0
  %511 = vdwg.mxu0
  %512 = vmatprep.subr.mxu0 0.0
  %513 = vmatpush1.msra.mxu0 %v428
  %514 = vmatprep.subr.mxu0 0.0
  %515 = vmatpush1.msra.mxu0 %v429
  %516 = vmatprep.subr.mxu0 0.0
  %517 = vmatpush1.msra.mxu0 %v430
  %518 = vmatprep.subr.mxu0 0.0
  %519 = vmatpush1.msra.mxu0 %v431
  %520 = vmatprep.subr.mxu0 0.0
  %521 = vmatpush1.msra.mxu0 0.0
  %522 = vmatprep.subr.mxu0 0.0
  %523 = vmatpush1.msra.mxu0 0.0
  %524 = vmatprep.subr.mxu0 0.0
  %525 = vmatpush1.msra.mxu0 0.0
  %526 = vmatprep.subr.mxu0 0.0
  %527 = vmatpush1.msra.mxu0 0.0
  %528 = vmatprep.subr.mxu0 0.0
  %529 = vmatpush1.msra.mxu0 0.0
  %530 = vmatprep.subr.mxu0 0.0
  %531 = vmatpush1.msra.mxu0 0.0
  %532 = vmatprep.subr.mxu0 0.0
  %533 = vmatpush1.msra.mxu0 0.0
  %534 = vmatprep.subr.mxu0 0.0
  %535 = vmatpush1.msra.mxu0 0.0
  %536 = vmatprep.subr.mxu0 0.0
  %537 = vmatpush1.msra.mxu0 0.0
  %538 = vmatprep.subr.mxu0 0.0
  %539 = vmatpush1.msra.mxu0 0.0
  %540 = vmatprep.subr.mxu0 0.0
  %541 = vmatpush1.msra.mxu0 0.0
  %542 = vmatprep.subr.mxu0 0.0
  %543 = vmatpush1.msra.mxu0 0.0
  %544 = vmatprep.subr.mxu0 0.0
  %545 = vmatpush1.msra.mxu0 0.0
  %546 = vmatprep.subr.mxu0 0.0
  %547 = vmatpush1.msra.mxu0 0.0
  %548 = vmatprep.subr.mxu0 0.0
  %549 = vmatpush1.msra.mxu0 0.0
  %550 = vmatprep.subr.mxu0 0.0
  %551 = vmatpush1.msra.mxu0 0.0
  %552 = vmatprep.subr.mxu0 0.0
  %553 = vmatpush1.msra.mxu0 0.0
  %554 = vmatprep.subr.mxu0 0.0
  %555 = vmatpush1.msra.mxu0 0.0
  %556 = vmatprep.subr.mxu0 0.0
  %557 = vmatpush1.msra.mxu0 0.0
  %558 = vmatprep.subr.mxu0 0.0
  %559 = vmatpush1.msra.mxu0 0.0
  %560 = vmatprep.subr.mxu0 0.0
  %561 = vmatpush1.msra.mxu0 0.0
  %562 = vmatprep.subr.mxu0 0.0
  %563 = vmatpush1.msra.mxu0 0.0
  %564 = vmatprep.subr.mxu0 0.0
  %565 = vmatpush1.msra.mxu0 0.0
  %566 = vmatprep.subr.mxu0 0.0
  %567 = vmatpush1.msra.mxu0 0.0
  %568 = vmatprep.subr.mxu0 0.0
  %569 = vmatpush1.msra.mxu0 0.0
  %570 = vmatprep.subr.mxu0 0.0
  %571 = vmatpush1.msra.mxu0 0.0
  %572 = vmatprep.subr.mxu0 0.0
  %573 = vmatpush1.msra.mxu0 0.0
  %574 = vmatprep.subr.mxu0 0.0
  %575 = vmatpush1.msra.mxu0 0.0
  %576 = vmatprep.mubr.f32.mxu0 0.0
  %577 = vmatmul.mubr.f32.gmra.mrb[0].mxu0 %v440
  %v578 = vpop.f32.mrb[0].mxu0
  %v579 = vadd.f32 0.0, %v578
  %v580 = vpop.f32.mrb[0].mxu0
  %581 = vdwg.mxu0
  %v583 = vlaneseq
  %v584 = vshrl.u32 %v583, 7
  %v585 = vsub.s32 0, %v584
  %v586 = vrot.slane %v436, %v585
  %588 = vmatprep.subr.mxu0 0.0
  %589 = vmatpush1.msra.mxu0 %v432
  %590 = vmatprep.subr.mxu0 0.0
  %591 = vmatpush1.msra.mxu0 %v433
  %592 = vmatprep.subr.mxu0 0.0
  %593 = vmatpush1.msra.mxu0 %v434
  %594 = vmatprep.subr.mxu0 0.0
  %595 = vmatpush1.msra.mxu0 %v435
  %596 = vmatprep.subr.mxu0 0.0
  %597 = vmatpush1.msra.mxu0 0.0
  %598 = vmatprep.subr.mxu0 0.0
  %599 = vmatpush1.msra.mxu0 0.0
  %600 = vmatprep.subr.mxu0 0.0
  %601 = vmatpush1.msra.mxu0 0.0
  %602 = vmatprep.subr.mxu0 0.0
  %603 = vmatpush1.msra.mxu0 0.0
  %604 = vmatprep.subr.mxu0 0.0
  %605 = vmatpush1.msra.mxu0 0.0
  %606 = vmatprep.subr.mxu0 0.0
  %607 = vmatpush1.msra.mxu0 0.0
  %608 = vmatprep.subr.mxu0 0.0
  %609 = vmatpush1.msra.mxu0 0.0
  %610 = vmatprep.subr.mxu0 0.0
  %611 = vmatpush1.msra.mxu0 0.0
  %612 = vmatprep.subr.mxu0 0.0
  %613 = vmatpush1.msra.mxu0 0.0
  %614 = vmatprep.subr.mxu0 0.0
  %615 = vmatpush1.msra.mxu0 0.0
  %616 = vmatprep.subr.mxu0 0.0
  %617 = vmatpush1.msra.mxu0 0.0
  %618 = vmatprep.subr.mxu0 0.0
  %619 = vmatpush1.msra.mxu0 0.0
  %620 = vmatprep.subr.mxu0 0.0
  %621 = vmatpush1.msra.mxu0 0.0
  %622 = vmatprep.subr.mxu0 0.0
  %623 = vmatpush1.msra.mxu0 0.0
  %624 = vmatprep.subr.mxu0 0.0
  %625 = vmatpush1.msra.mxu0 0.0
  %626 = vmatprep.subr.mxu0 0.0
  %627 = vmatpush1.msra.mxu0 0.0
  %628 = vmatprep.subr.mxu0 0.0
  %629 = vmatpush1.msra.mxu0 0.0
  %630 = vmatprep.subr.mxu0 0.0
  %631 = vmatpush1.msra.mxu0 0.0
  %632 = vmatprep.subr.mxu0 0.0
  %633 = vmatpush1.msra.mxu0 0.0
  %634 = vmatprep.subr.mxu0 0.0
  %635 = vmatpush1.msra.mxu0 0.0
  %636 = vmatprep.subr.mxu0 0.0
  %637 = vmatpush1.msra.mxu0 0.0
  %638 = vmatprep.subr.mxu0 0.0
  %639 = vmatpush1.msra.mxu0 0.0
  %640 = vmatprep.subr.mxu0 0.0
  %641 = vmatpush1.msra.mxu0 0.0
  %642 = vmatprep.subr.mxu0 0.0
  %643 = vmatpush1.msra.mxu0 0.0
  %644 = vmatprep.subr.mxu0 0.0
  %645 = vmatpush1.msra.mxu0 0.0
  %646 = vmatprep.subr.mxu0 0.0
  %647 = vmatpush1.msra.mxu0 0.0
  %648 = vmatprep.subr.mxu0 0.0
  %649 = vmatpush1.msra.mxu0 0.0
  %650 = vmatprep.subr.mxu0 0.0
  %651 = vmatpush1.msra.mxu0 0.0
  %652 = vmatprep.mubr.f32.mxu0 0.0
  %653 = vmatmul.mubr.f32.gmra.mrb[0].mxu0 %v440
  %v654 = vpop.f32.mrb[0].mxu0
  %v655 = vadd.f32 %v586, %v654
  %v656 = vpop.f32.mrb[0].mxu0
  %657 = vdwg.mxu0
  %v658 = vadd.f32 %v158, %v509
  %v659 = vxor.u32 %v658, 2147483648
  %v660 = vmul.f32 %v659, 1.442695
  %v661 = vpow.pop %v660
  %v662 = vadd.f32 %v661, 1.0
  %v663 = vrcp.pop %v662
  %v664 = vmul.f32 1.0, %v663
  %v665 = vadd.f32 %v272, %v579
  %v666 = vxor.u32 %v665, 2147483648
  %v667 = vmul.f32 %v666, 1.442695
  %v668 = vpow.pop %v667
  %v669 = vadd.f32 %v668, 1.0
  %v670 = vrcp.pop %v669
  %v671 = vmul.f32 1.0, %v670
  %v672 = vmul.f32 %v664, %v655
  %v673 = vadd.f32 %v386, %v672
  %v674 = vtanh.pop %v673
  %v675 = vsub.f32 1.0, %v671
  %v676 = vmul.f32 %v675, %v674
  %v677 = vmul.f32 %v671, %v437
  %v678 = vadd.f32 %v676, %v677
  %v679 = vadd.f32 %v678, 0.0
  %v681 = vsel %vm438, %v678, 0
  %683 = vmatprep.subr.mxu0 0.0
  %684 = vmatpush1.msra.mxu0 %v424
  %685 = vmatprep.subr.mxu0 0.0
  %686 = vmatpush1.msra.mxu0 %v425
  %687 = vmatprep.subr.mxu0 0.0
  %688 = vmatpush1.msra.mxu0 %v426
  %689 = vmatprep.subr.mxu0 0.0
  %690 = vmatpush1.msra.mxu0 %v427
  %691 = vmatprep.subr.mxu0 0.0
  %692 = vmatpush1.msra.mxu0 0.0
  %693 = vmatprep.subr.mxu0 0.0
  %694 = vmatpush1.msra.mxu0 0.0
  %695 = vmatprep.subr.mxu0 0.0
  %696 = vmatpush1.msra.mxu0 0.0
  %697 = vmatprep.subr.mxu0 0.0
  %698 = vmatpush1.msra.mxu0 0.0
  %699 = vmatprep.subr.mxu0 0.0
  %700 = vmatpush1.msra.mxu0 0.0
  %701 = vmatprep.subr.mxu0 0.0
  %702 = vmatpush1.msra.mxu0 0.0
  %703 = vmatprep.subr.mxu0 0.0
  %704 = vmatpush1.msra.mxu0 0.0
  %705 = vmatprep.subr.mxu0 0.0
  %706 = vmatpush1.msra.mxu0 0.0
  %707 = vmatprep.subr.mxu0 0.0
  %708 = vmatpush1.msra.mxu0 0.0
  %709 = vmatprep.subr.mxu0 0.0
  %710 = vmatpush1.msra.mxu0 0.0
  %711 = vmatprep.subr.mxu0 0.0
  %712 = vmatpush1.msra.mxu0 0.0
  %713 = vmatprep.subr.mxu0 0.0
  %714 = vmatpush1.msra.mxu0 0.0
  %715 = vmatprep.subr.mxu0 0.0
  %716 = vmatpush1.msra.mxu0 0.0
  %717 = vmatprep.subr.mxu0 0.0
  %718 = vmatpush1.msra.mxu0 0.0
  %719 = vmatprep.subr.mxu0 0.0
  %720 = vmatpush1.msra.mxu0 0.0
  %721 = vmatprep.subr.mxu0 0.0
  %722 = vmatpush1.msra.mxu0 0.0
  %723 = vmatprep.subr.mxu0 0.0
  %724 = vmatpush1.msra.mxu0 0.0
  %725 = vmatprep.subr.mxu0 0.0
  %726 = vmatpush1.msra.mxu0 0.0
  %727 = vmatprep.subr.mxu0 0.0
  %728 = vmatpush1.msra.mxu0 0.0
  %729 = vmatprep.subr.mxu0 0.0
  %730 = vmatpush1.msra.mxu0 0.0
  %731 = vmatprep.subr.mxu0 0.0
  %732 = vmatpush1.msra.mxu0 0.0
  %733 = vmatprep.subr.mxu0 0.0
  %734 = vmatpush1.msra.mxu0 0.0
  %735 = vmatprep.subr.mxu0 0.0
  %736 = vmatpush1.msra.mxu0 0.0
  %737 = vmatprep.subr.mxu0 0.0
  %738 = vmatpush1.msra.mxu0 0.0
  %739 = vmatprep.subr.mxu0 0.0
  %740 = vmatpush1.msra.mxu0 0.0
  %741 = vmatprep.subr.mxu0 0.0
  %742 = vmatpush1.msra.mxu0 0.0
  %743 = vmatprep.subr.mxu0 0.0
  %744 = vmatpush1.msra.mxu0 0.0
  %745 = vmatprep.subr.mxu0 0.0
  %746 = vmatpush1.msra.mxu0 0.0
  %747 = vmatprep.mubr.f32.mxu0 0.0
  %748 = vmatmul.mubr.f32.gmra.mrb[0].mxu0 %v681
  %v749 = vpop.f32.mrb[0].mxu0
  %v750 = vadd.f32 0.0, %v749
  %v751 = vpop.f32.mrb[0].mxu0
  %752 = vdwg.mxu0
  %753 = vmatprep.subr.mxu0 0.0
  %754 = vmatpush1.msra.mxu0 %v428
  %755 = vmatprep.subr.mxu0 0.0
  %756 = vmatpush1.msra.mxu0 %v429
  %757 = vmatprep.subr.mxu0 0.0
  %758 = vmatpush1.msra.mxu0 %v430
  %759 = vmatprep.subr.mxu0 0.0
  %760 = vmatpush1.msra.mxu0 %v431
  %761 = vmatprep.subr.mxu0 0.0
  %762 = vmatpush1.msra.mxu0 0.0
  %763 = vmatprep.subr.mxu0 0.0
  %764 = vmatpush1.msra.mxu0 0.0
  %765 = vmatprep.subr.mxu0 0.0
  %766 = vmatpush1.msra.mxu0 0.0
  %767 = vmatprep.subr.mxu0 0.0
  %768 = vmatpush1.msra.mxu0 0.0
  %769 = vmatprep.subr.mxu0 0.0
  %770 = vmatpush1.msra.mxu0 0.0
  %771 = vmatprep.subr.mxu0 0.0
  %772 = vmatpush1.msra.mxu0 0.0
  %773 = vmatprep.subr.mxu0 0.0
  %774 = vmatpush1.msra.mxu0 0.0
  %775 = vmatprep.subr.mxu0 0.0
  %776 = vmatpush1.msra.mxu0 0.0
  %777 = vmatprep.subr.mxu0 0.0
  %778 = vmatpush1.msra.mxu0 0.0
  %779 = vmatprep.subr.mxu0 0.0
  %780 = vmatpush1.msra.mxu0 0.0
  %781 = vmatprep.subr.mxu0 0.0
  %782 = vmatpush1.msra.mxu0 0.0
  %783 = vmatprep.subr.mxu0 0.0
  %784 = vmatpush1.msra.mxu0 0.0
  %785 = vmatprep.subr.mxu0 0.0
  %786 = vmatpush1.msra.mxu0 0.0
  %787 = vmatprep.subr.mxu0 0.0
  %788 = vmatpush1.msra.mxu0 0.0
  %789 = vmatprep.subr.mxu0 0.0
  %790 = vmatpush1.msra.mxu0 0.0
  %791 = vmatprep.subr.mxu0 0.0
  %792 = vmatpush1.msra.mxu0 0.0
  %793 = vmatprep.subr.mxu0 0.0
  %794 = vmatpush1.msra.mxu0 0.0
  %795 = vmatprep.subr.mxu0 0.0
  %796 = vmatpush1.msra.mxu0 0.0
  %797 = vmatprep.subr.mxu0 0.0
  %798 = vmatpush1.msra.mxu0 0.0
  %799 = vmatprep.subr.mxu0 0.0
  %800 = vmatpush1.msra.mxu0 0.0
  %801 = vmatprep.subr.mxu0 0.0
  %802 = vmatpush1.msra.mxu0 0.0
  %803 = vmatprep.subr.mxu0 0.0
  %804 = vmatpush1.msra.mxu0 0.0
  %805 = vmatprep.subr.mxu0 0.0
  %806 = vmatpush1.msra.mxu0 0.0
  %807 = vmatprep.subr.mxu0 0.0
  %808 = vmatpush1.msra.mxu0 0.0
  %809 = vmatprep.subr.mxu0 0.0
  %810 = vmatpush1.msra.mxu0 0.0
  %811 = vmatprep.subr.mxu0 0.0
  %812 = vmatpush1.msra.mxu0 0.0
  %813 = vmatprep.subr.mxu0 0.0
  %814 = vmatpush1.msra.mxu0 0.0
  %815 = vmatprep.subr.mxu0 0.0
  %816 = vmatpush1.msra.mxu0 0.0
  %817 = vmatprep.mubr.f32.mxu0 0.0
  %818 = vmatmul.mubr.f32.gmra.mrb[0].mxu0 %v681
  %v819 = vpop.f32.mrb[0].mxu0
  %v820 = vadd.f32 0.0, %v819
  %v821 = vpop.f32.mrb[0].mxu0
  %822 = vdwg.mxu0
  %823 = vmatprep.subr.mxu0 0.0
  %824 = vmatpush1.msra.mxu0 %v432
  %825 = vmatprep.subr.mxu0 0.0
  %826 = vmatpush1.msra.mxu0 %v433
  %827 = vmatprep.subr.mxu0 0.0
  %828 = vmatpush1.msra.mxu0 %v434
  %829 = vmatprep.subr.mxu0 0.0
  %830 = vmatpush1.msra.mxu0 %v435
  %831 = vmatprep.subr.mxu0 0.0
  %832 = vmatpush1.msra.mxu0 0.0
  %833 = vmatprep.subr.mxu0 0.0
  %834 = vmatpush1.msra.mxu0 0.0
  %835 = vmatprep.subr.mxu0 0.0
  %836 = vmatpush1.msra.mxu0 0.0
  %837 = vmatprep.subr.mxu0 0.0
  %838 = vmatpush1.msra.mxu0 0.0
  %839 = vmatprep.subr.mxu0 0.0
  %840 = vmatpush1.msra.mxu0 0.0
  %841 = vmatprep.subr.mxu0 0.0
  %842 = vmatpush1.msra.mxu0 0.0
  %843 = vmatprep.subr.mxu0 0.0
  %844 = vmatpush1.msra.mxu0 0.0
  %845 = vmatprep.subr.mxu0 0.0
  %846 = vmatpush1.msra.mxu0 0.0
  %847 = vmatprep.subr.mxu0 0.0
  %848 = vmatpush1.msra.mxu0 0.0
  %849 = vmatprep.subr.mxu0 0.0
  %850 = vmatpush1.msra.mxu0 0.0
  %851 = vmatprep.subr.mxu0 0.0
  %852 = vmatpush1.msra.mxu0 0.0
  %853 = vmatprep.subr.mxu0 0.0
  %854 = vmatpush1.msra.mxu0 0.0
  %855 = vmatprep.subr.mxu0 0.0
  %856 = vmatpush1.msra.mxu0 0.0
  %857 = vmatprep.subr.mxu0 0.0
  %858 = vmatpush1.msra.mxu0 0.0
  %859 = vmatprep.subr.mxu0 0.0
  %860 = vmatpush1.msra.mxu0 0.0
  %861 = vmatprep.subr.mxu0 0.0
  %862 = vmatpush1.msra.mxu0 0.0
  %863 = vmatprep.subr.mxu0 0.0
  %864 = vmatpush1.msra.mxu0 0.0
  %865 = vmatprep.subr.mxu0 0.0
  %866 = vmatpush1.msra.mxu0 0.0
  %867 = vmatprep.subr.mxu0 0.0
  %868 = vmatpush1.msra.mxu0 0.0
  %869 = vmatprep.subr.mxu0 0.0
  %870 = vmatpush1.msra.mxu0 0.0
  %871 = vmatprep.subr.mxu0 0.0
  %872 = vmatpush1.msra.mxu0 0.0
  %873 = vmatprep.subr.mxu0 0.0
  %874 = vmatpush1.msra.mxu0 0.0
  %875 = vmatprep.subr.mxu0 0.0
  %876 = vmatpush1.msra.mxu0 0.0
  %877 = vmatprep.subr.mxu0 0.0
  %878 = vmatpush1.msra.mxu0 0.0
  %879 = vmatprep.subr.mxu0 0.0
  %880 = vmatpush1.msra.mxu0 0.0
  %881 = vmatprep.subr.mxu0 0.0
  %882 = vmatpush1.msra.mxu0 0.0
  %883 = vmatprep.subr.mxu0 0.0
  %884 = vmatpush1.msra.mxu0 0.0
  %885 = vmatprep.subr.mxu0 0.0
  %886 = vmatpush1.msra.mxu0 0.0
  %887 = vmatprep.mubr.f32.mxu0 0.0
  %888 = vmatmul.mubr.f32.gmra.mrb[0].mxu0 %v681
  %v889 = vpop.f32.mrb[0].mxu0
  %v890 = vadd.f32 %v586, %v889
  %v891 = vpop.f32.mrb[0].mxu0
  %892 = vdwg.mxu0
  %v893 = vadd.f32 %v163, %v750
  %v894 = vxor.u32 %v893, 2147483648
  %v895 = vmul.f32 %v894, 1.442695
  %v896 = vpow.pop %v895
  %v897 = vadd.f32 %v896, 1.0
  %v898 = vrcp.pop %v897
  %v899 = vmul.f32 1.0, %v898
  %v900 = vadd.f32 %v277, %v820
  %v901 = vxor.u32 %v900, 2147483648
  %v902 = vmul.f32 %v901, 1.442695
  %v903 = vpow.pop %v902
  %v904 = vadd.f32 %v903, 1.0
  %v905 = vrcp.pop %v904
  %v906 = vmul.f32 1.0, %v905
  %v907 = vmul.f32 %v899, %v890
  %v908 = vadd.f32 %v391, %v907
  %v909 = vtanh.pop %v908
  %v910 = vsub.f32 1.0, %v906
  %v911 = vmul.f32 %v910, %v909
  %v912 = vmul.f32 %v906, %v678
  %v913 = vadd.f32 %v911, %v912
  %v914 = vadd.f32 %v679, %v913
  %v916 = vsel %vm438, %v913, 0
  %918 = vmatprep.subr.mxu0 0.0
  %919 = vmatpush1.msra.mxu0 %v424
  %920 = vmatprep.subr.mxu0 0.0
  %921 = vmatpush1.msra.mxu0 %v425
  %922 = vmatprep.subr.mxu0 0.0
  %923 = vmatpush1.msra.mxu0 %v426
  %924 = vmatprep.subr.mxu0 0.0
  %925 = vmatpush1.msra.mxu0 %v427
  %926 = vmatprep.subr.mxu0 0.0
  %927 = vmatpush1.msra.mxu0 0.0
  %928 = vmatprep.subr.mxu0 0.0
  %929 = vmatpush1.msra.mxu0 0.0
  %930 = vmatprep.subr.mxu0 0.0
  %931 = vmatpush1.msra.mxu0 0.0
  %932 = vmatprep.subr.mxu0 0.0
  %933 = vmatpush1.msra.mxu0 0.0
  %934 = vmatprep.subr.mxu0 0.0
  %935 = vmatpush1.msra.mxu0 0.0
  %936 = vmatprep.subr.mxu0 0.0
  %937 = vmatpush1.msra.mxu0 0.0
  %938 = vmatprep.subr.mxu0 0.0
  %939 = vmatpush1.msra.mxu0 0.0
  %940 = vmatprep.subr.mxu0 0.0
  %941 = vmatpush1.msra.mxu0 0.0
  %942 = vmatprep.subr.mxu0 0.0
  %943 = vmatpush1.msra.mxu0 0.0
  %944 = vmatprep.subr.mxu0 0.0
  %945 = vmatpush1.msra.mxu0 0.0
  %946 = vmatprep.subr.mxu0 0.0
  %947 = vmatpush1.msra.mxu0 0.0
  %948 = vmatprep.subr.mxu0 0.0
  %949 = vmatpush1.msra.mxu0 0.0
  %950 = vmatprep.subr.mxu0 0.0
  %951 = vmatpush1.msra.mxu0 0.0
  %952 = vmatprep.subr.mxu0 0.0
  %953 = vmatpush1.msra.mxu0 0.0
  %954 = vmatprep.subr.mxu0 0.0
  %955 = vmatpush1.msra.mxu0 0.0
  %956 = vmatprep.subr.mxu0 0.0
  %957 = vmatpush1.msra.mxu0 0.0
  %958 = vmatprep.subr.mxu0 0.0
  %959 = vmatpush1.msra.mxu0 0.0
  %960 = vmatprep.subr.mxu0 0.0
  %961 = vmatpush1.msra.mxu0 0.0
  %962 = vmatprep.subr.mxu0 0.0
  %963 = vmatpush1.msra.mxu0 0.0
  %964 = vmatprep.subr.mxu0 0.0
  %965 = vmatpush1.msra.mxu0 0.0
  %966 = vmatprep.subr.mxu0 0.0
  %967 = vmatpush1.msra.mxu0 0.0
  %968 = vmatprep.subr.mxu0 0.0
  %969 = vmatpush1.msra.mxu0 0.0
  %970 = vmatprep.subr.mxu0 0.0
  %971 = vmatpush1.msra.mxu0 0.0
  %972 = vmatprep.subr.mxu0 0.0
  %973 = vmatpush1.msra.mxu0 0.0
  %974 = vmatprep.subr.mxu0 0.0
  %975 = vmatpush1.msra.mxu0 0.0
  %976 = vmatprep.subr.mxu0 0.0
  %977 = vmatpush1.msra.mxu0 0.0
  %978 = vmatprep.subr.mxu0 0.0
  %979 = vmatpush1.msra.mxu0 0.0
  %980 = vmatprep.subr.mxu0 0.0
  %981 = vmatpush1.msra.mxu0 0.0
  %982 = vmatprep.mubr.f32.mxu0 0.0
  %983 = vmatmul.mubr.f32.gmra.mrb[0].mxu0 %v916
  %v984 = vpop.f32.mrb[0].mxu0
  %v985 = vadd.f32 0.0, %v984
  %v986 = vpop.f32.mrb[0].mxu0
  %987 = vdwg.mxu0
  %988 = vmatprep.subr.mxu0 0.0
  %989 = vmatpush1.msra.mxu0 %v428
  %990 = vmatprep.subr.mxu0 0.0
  %991 = vmatpush1.msra.mxu0 %v429
  %992 = vmatprep.subr.mxu0 0.0
  %993 = vmatpush1.msra.mxu0 %v430
  %994 = vmatprep.subr.mxu0 0.0
  %995 = vmatpush1.msra.mxu0 %v431
  %996 = vmatprep.subr.mxu0 0.0
  %997 = vmatpush1.msra.mxu0 0.0
  %998 = vmatprep.subr.mxu0 0.0
  %999 = vmatpush1.msra.mxu0 0.0
  %1000 = vmatprep.subr.mxu0 0.0
  %1001 = vmatpush1.msra.mxu0 0.0
  %1002 = vmatprep.subr.mxu0 0.0
  %1003 = vmatpush1.msra.mxu0 0.0
  %1004 = vmatprep.subr.mxu0 0.0
  %1005 = vmatpush1.msra.mxu0 0.0
  %1006 = vmatprep.subr.mxu0 0.0
  %1007 = vmatpush1.msra.mxu0 0.0
  %1008 = vmatprep.subr.mxu0 0.0
  %1009 = vmatpush1.msra.mxu0 0.0
  %1010 = vmatprep.subr.mxu0 0.0
  %1011 = vmatpush1.msra.mxu0 0.0
  %1012 = vmatprep.subr.mxu0 0.0
  %1013 = vmatpush1.msra.mxu0 0.0
  %1014 = vmatprep.subr.mxu0 0.0
  %1015 = vmatpush1.msra.mxu0 0.0
  %1016 = vmatprep.subr.mxu0 0.0
  %1017 = vmatpush1.msra.mxu0 0.0
  %1018 = vmatprep.subr.mxu0 0.0
  %1019 = vmatpush1.msra.mxu0 0.0
  %1020 = vmatprep.subr.mxu0 0.0
  %1021 = vmatpush1.msra.mxu0 0.0
  %1022 = vmatprep.subr.mxu0 0.0
  %1023 = vmatpush1.msra.mxu0 0.0
  %1024 = vmatprep.subr.mxu0 0.0
  %1025 = vmatpush1.msra.mxu0 0.0
  %1026 = vmatprep.subr.mxu0 0.0
  %1027 = vmatpush1.msra.mxu0 0.0
  %1028 = vmatprep.subr.mxu0 0.0
  %1029 = vmatpush1.msra.mxu0 0.0
  %1030 = vmatprep.subr.mxu0 0.0
  %1031 = vmatpush1.msra.mxu0 0.0
  %1032 = vmatprep.subr.mxu0 0.0
  %1033 = vmatpush1.msra.mxu0 0.0
  %1034 = vmatprep.subr.mxu0 0.0
  %1035 = vmatpush1.msra.mxu0 0.0
  %1036 = vmatprep.subr.mxu0 0.0
  %1037 = vmatpush1.msra.mxu0 0.0
  %1038 = vmatprep.subr.mxu0 0.0
  %1039 = vmatpush1.msra.mxu0 0.0
  %1040 = vmatprep.subr.mxu0 0.0
  %1041 = vmatpush1.msra.mxu0 0.0
  %1042 = vmatprep.subr.mxu0 0.0
  %1043 = vmatpush1.msra.mxu0 0.0
  %1044 = vmatprep.subr.mxu0 0.0
  %1045 = vmatpush1.msra.mxu0 0.0
  %1046 = vmatprep.subr.mxu0 0.0
  %1047 = vmatpush1.msra.mxu0 0.0
  %1048 = vmatprep.subr.mxu0 0.0
  %1049 = vmatpush1.msra.mxu0 0.0
  %1050 = vmatprep.subr.mxu0 0.0
  %1051 = vmatpush1.msra.mxu0 0.0
  %1052 = vmatprep.mubr.f32.mxu0 0.0
  %1053 = vmatmul.mubr.f32.gmra.mrb[0].mxu0 %v916
  %v1054 = vpop.f32.mrb[0].mxu0
  %v1055 = vadd.f32 0.0, %v1054
  %v1056 = vpop.f32.mrb[0].mxu0
  %1057 = vdwg.mxu0
  %1058 = vmatprep.subr.mxu0 0.0
  %1059 = vmatpush1.msra.mxu0 %v432
  %1060 = vmatprep.subr.mxu0 0.0
  %1061 = vmatpush1.msra.mxu0 %v433
  %1062 = vmatprep.subr.mxu0 0.0
  %1063 = vmatpush1.msra.mxu0 %v434
  %1064 = vmatprep.subr.mxu0 0.0
  %1065 = vmatpush1.msra.mxu0 %v435
  %1066 = vmatprep.subr.mxu0 0.0
  %1067 = vmatpush1.msra.mxu0 0.0
  %1068 = vmatprep.subr.mxu0 0.0
  %1069 = vmatpush1.msra.mxu0 0.0
  %1070 = vmatprep.subr.mxu0 0.0
  %1071 = vmatpush1.msra.mxu0 0.0
  %1072 = vmatprep.subr.mxu0 0.0
  %1073 = vmatpush1.msra.mxu0 0.0
  %1074 = vmatprep.subr.mxu0 0.0
  %1075 = vmatpush1.msra.mxu0 0.0
  %1076 = vmatprep.subr.mxu0 0.0
  %1077 = vmatpush1.msra.mxu0 0.0
  %1078 = vmatprep.subr.mxu0 0.0
  %1079 = vmatpush1.msra.mxu0 0.0
  %1080 = vmatprep.subr.mxu0 0.0
  %1081 = vmatpush1.msra.mxu0 0.0
  %1082 = vmatprep.subr.mxu0 0.0
  %1083 = vmatpush1.msra.mxu0 0.0
  %1084 = vmatprep.subr.mxu0 0.0
  %1085 = vmatpush1.msra.mxu0 0.0
  %1086 = vmatprep.subr.mxu0 0.0
  %1087 = vmatpush1.msra.mxu0 0.0
  %1088 = vmatprep.subr.mxu0 0.0
  %1089 = vmatpush1.msra.mxu0 0.0
  %1090 = vmatprep.subr.mxu0 0.0
  %1091 = vmatpush1.msra.mxu0 0.0
  %1092 = vmatprep.subr.mxu0 0.0
  %1093 = vmatpush1.msra.mxu0 0.0
  %1094 = vmatprep.subr.mxu0 0.0
  %1095 = vmatpush1.msra.mxu0 0.0
  %1096 = vmatprep.subr.mxu0 0.0
  %1097 = vmatpush1.msra.mxu0 0.0
  %1098 = vmatprep.subr.mxu0 0.0
  %1099 = vmatpush1.msra.mxu0 0.0
  %1100 = vmatprep.subr.mxu0 0.0
  %1101 = vmatpush1.msra.mxu0 0.0
  %1102 = vmatprep.subr.mxu0 0.0
  %1103 = vmatpush1.msra.mxu0 0.0
  %1104 = vmatprep.subr.mxu0 0.0
  %1105 = vmatpush1.msra.mxu0 0.0
  %1106 = vmatprep.subr.mxu0 0.0
  %1107 = vmatpush1.msra.mxu0 0.0
  %1108 = vmatprep.subr.mxu0 0.0
  %1109 = vmatpush1.msra.mxu0 0.0
  %1110 = vmatprep.subr.mxu0 0.0
  %1111 = vmatpush1.msra.mxu0 0.0
  %1112 = vmatprep.subr.mxu0 0.0
  %1113 = vmatpush1.msra.mxu0 0.0
  %1114 = vmatprep.subr.mxu0 0.0
  %1115 = vmatpush1.msra.mxu0 0.0
  %1116 = vmatprep.subr.mxu0 0.0
  %1117 = vmatpush1.msra.mxu0 0.0
  %1118 = vmatprep.subr.mxu0 0.0
  %1119 = vmatpush1.msra.mxu0 0.0
  %1120 = vmatprep.subr.mxu0 0.0
  %1121 = vmatpush1.msra.mxu0 0.0
  %1122 = vmatprep.mubr.f32.mxu0 0.0
  %1123 = vmatmul.mubr.f32.gmra.mrb[0].mxu0 %v916
  %v1124 = vpop.f32.mrb[0].mxu0
  %v1125 = vadd.f32 %v586, %v1124
  %v1126 = vpop.f32.mrb[0].mxu0
  %1127 = vdwg.mxu0
  %v1128 = vadd.f32 %v168, %v985
  %v1129 = vxor.u32 %v1128, 2147483648
  %v1130 = vmul.f32 %v1129, 1.442695
  %v1131 = vpow.pop %v1130
  %v1132 = vadd.f32 %v1131, 1.0
  %v1133 = vrcp.pop %v1132
  %v1134 = vmul.f32 1.0, %v1133
  %v1135 = vadd.f32 %v282, %v1055
  %v1136 = vxor.u32 %v1135, 2147483648
  %v1137 = vmul.f32 %v1136, 1.442695
  %v1138 = vpow.pop %v1137
  %v1139 = vadd.f32 %v1138, 1.0
  %v1140 = vrcp.pop %v1139
  %v1141 = vmul.f32 1.0, %v1140
  %v1142 = vmul.f32 %v1134, %v1125
  %v1143 = vadd.f32 %v396, %v1142
  %v1144 = vtanh.pop %v1143
  %v1145 = vsub.f32 1.0, %v1141
  %v1146 = vmul.f32 %v1145, %v1144
  %v1147 = vmul.f32 %v1141, %v913
  %v1148 = vadd.f32 %v1146, %v1147
  %v1149 = vadd.f32 %v914, %v1148
  %v1151 = vsel %vm438, %v1148, 0
  %1153 = vmatprep.subr.mxu0 0.0
  %1154 = vmatpush1.msra.mxu0 %v424
  %1155 = vmatprep.subr.mxu0 0.0
  %1156 = vmatpush1.msra.mxu0 %v425
  %1157 = vmatprep.subr.mxu0 0.0
  %1158 = vmatpush1.msra.mxu0 %v426
  %1159 = vmatprep.subr.mxu0 0.0
  %1160 = vmatpush1.msra.mxu0 %v427
  %1161 = vmatprep.subr.mxu0 0.0
  %1162 = vmatpush1.msra.mxu0 0.0
  %1163 = vmatprep.subr.mxu0 0.0
  %1164 = vmatpush1.msra.mxu0 0.0
  %1165 = vmatprep.subr.mxu0 0.0
  %1166 = vmatpush1.msra.mxu0 0.0
  %1167 = vmatprep.subr.mxu0 0.0
  %1168 = vmatpush1.msra.mxu0 0.0
  %1169 = vmatprep.subr.mxu0 0.0
  %1170 = vmatpush1.msra.mxu0 0.0
  %1171 = vmatprep.subr.mxu0 0.0
  %1172 = vmatpush1.msra.mxu0 0.0
  %1173 = vmatprep.subr.mxu0 0.0
  %1174 = vmatpush1.msra.mxu0 0.0
  %1175 = vmatprep.subr.mxu0 0.0
  %1176 = vmatpush1.msra.mxu0 0.0
  %1177 = vmatprep.subr.mxu0 0.0
  %1178 = vmatpush1.msra.mxu0 0.0
  %1179 = vmatprep.subr.mxu0 0.0
  %1180 = vmatpush1.msra.mxu0 0.0
  %1181 = vmatprep.subr.mxu0 0.0
  %1182 = vmatpush1.msra.mxu0 0.0
  %1183 = vmatprep.subr.mxu0 0.0
  %1184 = vmatpush1.msra.mxu0 0.0
  %1185 = vmatprep.subr.mxu0 0.0
  %1186 = vmatpush1.msra.mxu0 0.0
  %1187 = vmatprep.subr.mxu0 0.0
  %1188 = vmatpush1.msra.mxu0 0.0
  %1189 = vmatprep.subr.mxu0 0.0
  %1190 = vmatpush1.msra.mxu0 0.0
  %1191 = vmatprep.subr.mxu0 0.0
  %1192 = vmatpush1.msra.mxu0 0.0
  %1193 = vmatprep.subr.mxu0 0.0
  %1194 = vmatpush1.msra.mxu0 0.0
  %1195 = vmatprep.subr.mxu0 0.0
  %1196 = vmatpush1.msra.mxu0 0.0
  %1197 = vmatprep.subr.mxu0 0.0
  %1198 = vmatpush1.msra.mxu0 0.0
  %1199 = vmatprep.subr.mxu0 0.0
  %1200 = vmatpush1.msra.mxu0 0.0
  %1201 = vmatprep.subr.mxu0 0.0
  %1202 = vmatpush1.msra.mxu0 0.0
  %1203 = vmatprep.subr.mxu0 0.0
  %1204 = vmatpush1.msra.mxu0 0.0
  %1205 = vmatprep.subr.mxu0 0.0
  %1206 = vmatpush1.msra.mxu0 0.0
  %1207 = vmatprep.subr.mxu0 0.0
  %1208 = vmatpush1.msra.mxu0 0.0
  %1209 = vmatprep.subr.mxu0 0.0
  %1210 = vmatpush1.msra.mxu0 0.0
  %1211 = vmatprep.subr.mxu0 0.0
  %1212 = vmatpush1.msra.mxu0 0.0
  %1213 = vmatprep.subr.mxu0 0.0
  %1214 = vmatpush1.msra.mxu0 0.0
  %1215 = vmatprep.subr.mxu0 0.0
  %1216 = vmatpush1.msra.mxu0 0.0
  %1217 = vmatprep.mubr.f32.mxu0 0.0
  %1218 = vmatmul.mubr.f32.gmra.mrb[0].mxu0 %v1151
  %v1219 = vpop.f32.mrb[0].mxu0
  %v1220 = vadd.f32 0.0, %v1219
  %v1221 = vpop.f32.mrb[0].mxu0
  %1222 = vdwg.mxu0
  %1223 = vmatprep.subr.mxu0 0.0
  %1224 = vmatpush1.msra.mxu0 %v428
  %1225 = vmatprep.subr.mxu0 0.0
  %1226 = vmatpush1.msra.mxu0 %v429
  %1227 = vmatprep.subr.mxu0 0.0
  %1228 = vmatpush1.msra.mxu0 %v430
  %1229 = vmatprep.subr.mxu0 0.0
  %1230 = vmatpush1.msra.mxu0 %v431
  %1231 = vmatprep.subr.mxu0 0.0
  %1232 = vmatpush1.msra.mxu0 0.0
  %1233 = vmatprep.subr.mxu0 0.0
  %1234 = vmatpush1.msra.mxu0 0.0
  %1235 = vmatprep.subr.mxu0 0.0
  %1236 = vmatpush1.msra.mxu0 0.0
  %1237 = vmatprep.subr.mxu0 0.0
  %1238 = vmatpush1.msra.mxu0 0.0
  %1239 = vmatprep.subr.mxu0 0.0
  %1240 = vmatpush1.msra.mxu0 0.0
  %1241 = vmatprep.subr.mxu0 0.0
  %1242 = vmatpush1.msra.mxu0 0.0
  %1243 = vmatprep.subr.mxu0 0.0
  %1244 = vmatpush1.msra.mxu0 0.0
  %1245 = vmatprep.subr.mxu0 0.0
  %1246 = vmatpush1.msra.mxu0 0.0
  %1247 = vmatprep.subr.mxu0 0.0
  %1248 = vmatpush1.msra.mxu0 0.0
  %1249 = vmatprep.subr.mxu0 0.0
  %1250 = vmatpush1.msra.mxu0 0.0
  %1251 = vmatprep.subr.mxu0 0.0
  %1252 = vmatpush1.msra.mxu0 0.0
  %1253 = vmatprep.subr.mxu0 0.0
  %1254 = vmatpush1.msra.mxu0 0.0
  %1255 = vmatprep.subr.mxu0 0.0
  %1256 = vmatpush1.msra.mxu0 0.0
  %1257 = vmatprep.subr.mxu0 0.0
  %1258 = vmatpush1.msra.mxu0 0.0
  %1259 = vmatprep.subr.mxu0 0.0
  %1260 = vmatpush1.msra.mxu0 0.0
  %1261 = vmatprep.subr.mxu0 0.0
  %1262 = vmatpush1.msra.mxu0 0.0
  %1263 = vmatprep.subr.mxu0 0.0
  %1264 = vmatpush1.msra.mxu0 0.0
  %1265 = vmatprep.subr.mxu0 0.0
  %1266 = vmatpush1.msra.mxu0 0.0
  %1267 = vmatprep.subr.mxu0 0.0
  %1268 = vmatpush1.msra.mxu0 0.0
  %1269 = vmatprep.subr.mxu0 0.0
  %1270 = vmatpush1.msra.mxu0 0.0
  %1271 = vmatprep.subr.mxu0 0.0
  %1272 = vmatpush1.msra.mxu0 0.0
  %1273 = vmatprep.subr.mxu0 0.0
  %1274 = vmatpush1.msra.mxu0 0.0
  %1275 = vmatprep.subr.mxu0 0.0
  %1276 = vmatpush1.msra.mxu0 0.0
  %1277 = vmatprep.subr.mxu0 0.0
  %1278 = vmatpush1.msra.mxu0 0.0
  %1279 = vmatprep.subr.mxu0 0.0
  %1280 = vmatpush1.msra.mxu0 0.0
  %1281 = vmatprep.subr.mxu0 0.0
  %1282 = vmatpush1.msra.mxu0 0.0
  %1283 = vmatprep.subr.mxu0 0.0
  %1284 = vmatpush1.msra.mxu0 0.0
  %1285 = vmatprep.subr.mxu0 0.0
  %1286 = vmatpush1.msra.mxu0 0.0
  %1287 = vmatprep.mubr.f32.mxu0 0.0
  %1288 = vmatmul.mubr.f32.gmra.mrb[0].mxu0 %v1151
  %v1289 = vpop.f32.mrb[0].mxu0
  %v1290 = vadd.f32 0.0, %v1289
  %v1291 = vpop.f32.mrb[0].mxu0
  %1292 = vdwg.mxu0
  %1293 = vmatprep.subr.mxu0 0.0
  %1294 = vmatpush1.msra.mxu0 %v432
  %1295 = vmatprep.subr.mxu0 0.0
  %1296 = vmatpush1.msra.mxu0 %v433
  %1297 = vmatprep.subr.mxu0 0.0
  %1298 = vmatpush1.msra.mxu0 %v434
  %1299 = vmatprep.subr.mxu0 0.0
  %1300 = vmatpush1.msra.mxu0 %v435
  %1301 = vmatprep.subr.mxu0 0.0
  %1302 = vmatpush1.msra.mxu0 0.0
  %1303 = vmatprep.subr.mxu0 0.0
  %1304 = vmatpush1.msra.mxu0 0.0
  %1305 = vmatprep.subr.mxu0 0.0
  %1306 = vmatpush1.msra.mxu0 0.0
  %1307 = vmatprep.subr.mxu0 0.0
  %1308 = vmatpush1.msra.mxu0 0.0
  %1309 = vmatprep.subr.mxu0 0.0
  %1310 = vmatpush1.msra.mxu0 0.0
  %1311 = vmatprep.subr.mxu0 0.0
  %1312 = vmatpush1.msra.mxu0 0.0
  %1313 = vmatprep.subr.mxu0 0.0
  %1314 = vmatpush1.msra.mxu0 0.0
  %1315 = vmatprep.subr.mxu0 0.0
  %1316 = vmatpush1.msra.mxu0 0.0
  %1317 = vmatprep.subr.mxu0 0.0
  %1318 = vmatpush1.msra.mxu0 0.0
  %1319 = vmatprep.subr.mxu0 0.0
  %1320 = vmatpush1.msra.mxu0 0.0
  %1321 = vmatprep.subr.mxu0 0.0
  %1322 = vmatpush1.msra.mxu0 0.0
  %1323 = vmatprep.subr.mxu0 0.0
  %1324 = vmatpush1.msra.mxu0 0.0
  %1325 = vmatprep.subr.mxu0 0.0
  %1326 = vmatpush1.msra.mxu0 0.0
  %1327 = vmatprep.subr.mxu0 0.0
  %1328 = vmatpush1.msra.mxu0 0.0
  %1329 = vmatprep.subr.mxu0 0.0
  %1330 = vmatpush1.msra.mxu0 0.0
  %1331 = vmatprep.subr.mxu0 0.0
  %1332 = vmatpush1.msra.mxu0 0.0
  %1333 = vmatprep.subr.mxu0 0.0
  %1334 = vmatpush1.msra.mxu0 0.0
  %1335 = vmatprep.subr.mxu0 0.0
  %1336 = vmatpush1.msra.mxu0 0.0
  %1337 = vmatprep.subr.mxu0 0.0
  %1338 = vmatpush1.msra.mxu0 0.0
  %1339 = vmatprep.subr.mxu0 0.0
  %1340 = vmatpush1.msra.mxu0 0.0
  %1341 = vmatprep.subr.mxu0 0.0
  %1342 = vmatpush1.msra.mxu0 0.0
  %1343 = vmatprep.subr.mxu0 0.0
  %1344 = vmatpush1.msra.mxu0 0.0
  %1345 = vmatprep.subr.mxu0 0.0
  %1346 = vmatpush1.msra.mxu0 0.0
  %1347 = vmatprep.subr.mxu0 0.0
  %1348 = vmatpush1.msra.mxu0 0.0
  %1349 = vmatprep.subr.mxu0 0.0
  %1350 = vmatpush1.msra.mxu0 0.0
  %1351 = vmatprep.subr.mxu0 0.0
  %1352 = vmatpush1.msra.mxu0 0.0
  %1353 = vmatprep.subr.mxu0 0.0
  %1354 = vmatpush1.msra.mxu0 0.0
  %1355 = vmatprep.subr.mxu0 0.0
  %1356 = vmatpush1.msra.mxu0 0.0
  %1357 = vmatprep.mubr.f32.mxu0 0.0
  %1358 = vmatmul.mubr.f32.gmra.mrb[0].mxu0 %v1151
  %v1359 = vpop.f32.mrb[0].mxu0
  %v1360 = vadd.f32 %v586, %v1359
  %v1361 = vpop.f32.mrb[0].mxu0
  %1362 = vdwg.mxu0
  %v1363 = vadd.f32 %v173, %v1220
  %v1364 = vxor.u32 %v1363, 2147483648
  %v1365 = vmul.f32 %v1364, 1.442695
  %v1366 = vpow.pop %v1365
  %v1367 = vadd.f32 %v1366, 1.0
  %v1368 = vrcp.pop %v1367
  %v1369 = vmul.f32 1.0, %v1368
  %v1370 = vadd.f32 %v287, %v1290
  %v1371 = vxor.u32 %v1370, 2147483648
  %v1372 = vmul.f32 %v1371, 1.442695
  %v1373 = vpow.pop %v1372
  %v1374 = vadd.f32 %v1373, 1.0
  %v1375 = vrcp.pop %v1374
  %v1376 = vmul.f32 1.0, %v1375
  %v1377 = vmul.f32 %v1369, %v1360
  %v1378 = vadd.f32 %v401, %v1377
  %v1379 = vtanh.pop %v1378
  %v1380 = vsub.f32 1.0, %v1376
  %v1381 = vmul.f32 %v1380, %v1379
  %v1382 = vmul.f32 %v1376, %v1148
  %v1383 = vadd.f32 %v1381, %v1382
  %v1384 = vadd.f32 %v1149, %v1383
  %v1386 = vsel %vm438, %v1383, 0
  %1388 = vmatprep.subr.mxu0 0.0
  %1389 = vmatpush1.msra.mxu0 %v424
  %1390 = vmatprep.subr.mxu0 0.0
  %1391 = vmatpush1.msra.mxu0 %v425
  %1392 = vmatprep.subr.mxu0 0.0
  %1393 = vmatpush1.msra.mxu0 %v426
  %1394 = vmatprep.subr.mxu0 0.0
  %1395 = vmatpush1.msra.mxu0 %v427
  %1396 = vmatprep.subr.mxu0 0.0
  %1397 = vmatpush1.msra.mxu0 0.0
  %1398 = vmatprep.subr.mxu0 0.0
  %1399 = vmatpush1.msra.mxu0 0.0
  %1400 = vmatprep.subr.mxu0 0.0
  %1401 = vmatpush1.msra.mxu0 0.0
  %1402 = vmatprep.subr.mxu0 0.0
  %1403 = vmatpush1.msra.mxu0 0.0
  %1404 = vmatprep.subr.mxu0 0.0
  %1405 = vmatpush1.msra.mxu0 0.0
  %1406 = vmatprep.subr.mxu0 0.0
  %1407 = vmatpush1.msra.mxu0 0.0
  %1408 = vmatprep.subr.mxu0 0.0
  %1409 = vmatpush1.msra.mxu0 0.0
  %1410 = vmatprep.subr.mxu0 0.0
  %1411 = vmatpush1.msra.mxu0 0.0
  %1412 = vmatprep.subr.mxu0 0.0
  %1413 = vmatpush1.msra.mxu0 0.0
  %1414 = vmatprep.subr.mxu0 0.0
  %1415 = vmatpush1.msra.mxu0 0.0
  %1416 = vmatprep.subr.mxu0 0.0
  %1417 = vmatpush1.msra.mxu0 0.0
  %1418 = vmatprep.subr.mxu0 0.0
  %1419 = vmatpush1.msra.mxu0 0.0
  %1420 = vmatprep.subr.mxu0 0.0
  %1421 = vmatpush1.msra.mxu0 0.0
  %1422 = vmatprep.subr.mxu0 0.0
  %1423 = vmatpush1.msra.mxu0 0.0
  %1424 = vmatprep.subr.mxu0 0.0
  %1425 = vmatpush1.msra.mxu0 0.0
  %1426 = vmatprep.subr.mxu0 0.0
  %1427 = vmatpush1.msra.mxu0 0.0
  %1428 = vmatprep.subr.mxu0 0.0
  %1429 = vmatpush1.msra.mxu0 0.0
  %1430 = vmatprep.subr.mxu0 0.0
  %1431 = vmatpush1.msra.mxu0 0.0
  %1432 = vmatprep.subr.mxu0 0.0
  %1433 = vmatpush1.msra.mxu0 0.0
  %1434 = vmatprep.subr.mxu0 0.0
  %1435 = vmatpush1.msra.mxu0 0.0
  %1436 = vmatprep.subr.mxu0 0.0
  %1437 = vmatpush1.msra.mxu0 0.0
  %1438 = vmatprep.subr.mxu0 0.0
  %1439 = vmatpush1.msra.mxu0 0.0
  %1440 = vmatprep.subr.mxu0 0.0
  %1441 = vmatpush1.msra.mxu0 0.0
  %1442 = vmatprep.subr.mxu0 0.0
  %1443 = vmatpush1.msra.mxu0 0.0
  %1444 = vmatprep.subr.mxu0 0.0
  %1445 = vmatpush1.msra.mxu0 0.0
  %1446 = vmatprep.subr.mxu0 0.0
  %1447 = vmatpush1.msra.mxu0 0.0
  %1448 = vmatprep.subr.mxu0 0.0
  %1449 = vmatpush1.msra.mxu0 0.0
  %1450 = vmatprep.subr.mxu0 0.0
  %1451 = vmatpush1.msra.mxu0 0.0
  %1452 = vmatprep.mubr.f32.mxu0 0.0
  %1453 = vmatmul.mubr.f32.gmra.mrb[0].mxu0 %v1386
  %v1454 = vpop.f32.mrb[0].mxu0
  %v1455 = vadd.f32 0.0, %v1454
  %v1456 = vpop.f32.mrb[0].mxu0
  %1457 = vdwg.mxu0
  %1458 = vmatprep.subr.mxu0 0.0
  %1459 = vmatpush1.msra.mxu0 %v428
  %1460 = vmatprep.subr.mxu0 0.0
  %1461 = vmatpush1.msra.mxu0 %v429
  %1462 = vmatprep.subr.mxu0 0.0
  %1463 = vmatpush1.msra.mxu0 %v430
  %1464 = vmatprep.subr.mxu0 0.0
  %1465 = vmatpush1.msra.mxu0 %v431
  %1466 = vmatprep.subr.mxu0 0.0
  %1467 = vmatpush1.msra.mxu0 0.0
  %1468 = vmatprep.subr.mxu0 0.0
  %1469 = vmatpush1.msra.mxu0 0.0
  %1470 = vmatprep.subr.mxu0 0.0
  %1471 = vmatpush1.msra.mxu0 0.0
  %1472 = vmatprep.subr.mxu0 0.0
  %1473 = vmatpush1.msra.mxu0 0.0
  %1474 = vmatprep.subr.mxu0 0.0
  %1475 = vmatpush1.msra.mxu0 0.0
  %1476 = vmatprep.subr.mxu0 0.0
  %1477 = vmatpush1.msra.mxu0 0.0
  %1478 = vmatprep.subr.mxu0 0.0
  %1479 = vmatpush1.msra.mxu0 0.0
  %1480 = vmatprep.subr.mxu0 0.0
  %1481 = vmatpush1.msra.mxu0 0.0
  %1482 = vmatprep.subr.mxu0 0.0
  %1483 = vmatpush1.msra.mxu0 0.0
  %1484 = vmatprep.subr.mxu0 0.0
  %1485 = vmatpush1.msra.mxu0 0.0
  %1486 = vmatprep.subr.mxu0 0.0
  %1487 = vmatpush1.msra.mxu0 0.0
  %1488 = vmatprep.subr.mxu0 0.0
  %1489 = vmatpush1.msra.mxu0 0.0
  %1490 = vmatprep.subr.mxu0 0.0
  %1491 = vmatpush1.msra.mxu0 0.0
  %1492 = vmatprep.subr.mxu0 0.0
  %1493 = vmatpush1.msra.mxu0 0.0
  %1494 = vmatprep.subr.mxu0 0.0
  %1495 = vmatpush1.msra.mxu0 0.0
  %1496 = vmatprep.subr.mxu0 0.0
  %1497 = vmatpush1.msra.mxu0 0.0
  %1498 = vmatprep.subr.mxu0 0.0
  %1499 = vmatpush1.msra.mxu0 0.0
  %1500 = vmatprep.subr.mxu0 0.0
  %1501 = vmatpush1.msra.mxu0 0.0
  %1502 = vmatprep.subr.mxu0 0.0
  %1503 = vmatpush1.msra.mxu0 0.0
  %1504 = vmatprep.subr.mxu0 0.0
  %1505 = vmatpush1.msra.mxu0 0.0
  %1506 = vmatprep.subr.mxu0 0.0
  %1507 = vmatpush1.msra.mxu0 0.0
  %1508 = vmatprep.subr.mxu0 0.0
  %1509 = vmatpush1.msra.mxu0 0.0
  %1510 = vmatprep.subr.mxu0 0.0
  %1511 = vmatpush1.msra.mxu0 0.0
  %1512 = vmatprep.subr.mxu0 0.0
  %1513 = vmatpush1.msra.mxu0 0.0
  %1514 = vmatprep.subr.mxu0 0.0
  %1515 = vmatpush1.msra.mxu0 0.0
  %1516 = vmatprep.subr.mxu0 0.0
  %1517 = vmatpush1.msra.mxu0 0.0
  %1518 = vmatprep.subr.mxu0 0.0
  %1519 = vmatpush1.msra.mxu0 0.0
  %1520 = vmatprep.subr.mxu0 0.0
  %1521 = vmatpush1.msra.mxu0 0.0
  %1522 = vmatprep.mubr.f32.mxu0 0.0
  %1523 = vmatmul.mubr.f32.gmra.mrb[0].mxu0 %v1386
  %v1524 = vpop.f32.mrb[0].mxu0
  %v1525 = vadd.f32 0.0, %v1524
  %v1526 = vpop.f32.mrb[0].mxu0
  %1527 = vdwg.mxu0
  %1528 = vmatprep.subr.mxu0 0.0
  %1529 = vmatpush1.msra.mxu0 %v432
  %1530 = vmatprep.subr.mxu0 0.0
  %1531 = vmatpush1.msra.mxu0 %v433
  %1532 = vmatprep.subr.mxu0 0.0
  %1533 = vmatpush1.msra.mxu0 %v434
  %1534 = vmatprep.subr.mxu0 0.0
  %1535 = vmatpush1.msra.mxu0 %v435
  %1536 = vmatprep.subr.mxu0 0.0
  %1537 = vmatpush1.msra.mxu0 0.0
  %1538 = vmatprep.subr.mxu0 0.0
  %1539 = vmatpush1.msra.mxu0 0.0
  %1540 = vmatprep.subr.mxu0 0.0
  %1541 = vmatpush1.msra.mxu0 0.0
  %1542 = vmatprep.subr.mxu0 0.0
  %1543 = vmatpush1.msra.mxu0 0.0
  %1544 = vmatprep.subr.mxu0 0.0
  %1545 = vmatpush1.msra.mxu0 0.0
  %1546 = vmatprep.subr.mxu0 0.0
  %1547 = vmatpush1.msra.mxu0 0.0
  %1548 = vmatprep.subr.mxu0 0.0
  %1549 = vmatpush1.msra.mxu0 0.0
  %1550 = vmatprep.subr.mxu0 0.0
  %1551 = vmatpush1.msra.mxu0 0.0
  %1552 = vmatprep.subr.mxu0 0.0
  %1553 = vmatpush1.msra.mxu0 0.0
  %1554 = vmatprep.subr.mxu0 0.0
  %1555 = vmatpush1.msra.mxu0 0.0
  %1556 = vmatprep.subr.mxu0 0.0
  %1557 = vmatpush1.msra.mxu0 0.0
  %1558 = vmatprep.subr.mxu0 0.0
  %1559 = vmatpush1.msra.mxu0 0.0
  %1560 = vmatprep.subr.mxu0 0.0
  %1561 = vmatpush1.msra.mxu0 0.0
  %1562 = vmatprep.subr.mxu0 0.0
  %1563 = vmatpush1.msra.mxu0 0.0
  %1564 = vmatprep.subr.mxu0 0.0
  %1565 = vmatpush1.msra.mxu0 0.0
  %1566 = vmatprep.subr.mxu0 0.0
  %1567 = vmatpush1.msra.mxu0 0.0
  %1568 = vmatprep.subr.mxu0 0.0
  %1569 = vmatpush1.msra.mxu0 0.0
  %1570 = vmatprep.subr.mxu0 0.0
  %1571 = vmatpush1.msra.mxu0 0.0
  %1572 = vmatprep.subr.mxu0 0.0
  %1573 = vmatpush1.msra.mxu0 0.0
  %1574 = vmatprep.subr.mxu0 0.0
  %1575 = vmatpush1.msra.mxu0 0.0
  %1576 = vmatprep.subr.mxu0 0.0
  %1577 = vmatpush1.msra.mxu0 0.0
  %1578 = vmatprep.subr.mxu0 0.0
  %1579 = vmatpush1.msra.mxu0 0.0
  %1580 = vmatprep.subr.mxu0 0.0
  %1581 = vmatpush1.msra.mxu0 0.0
  %1582 = vmatprep.subr.mxu0 0.0
  %1583 = vmatpush1.msra.mxu0 0.0
  %1584 = vmatprep.subr.mxu0 0.0
  %1585 = vmatpush1.msra.mxu0 0.0
  %1586 = vmatprep.subr.mxu0 0.0
  %1587 = vmatpush1.msra.mxu0 0.0
  %1588 = vmatprep.subr.mxu0 0.0
  %1589 = vmatpush1.msra.mxu0 0.0
  %1590 = vmatprep.subr.mxu0 0.0
  %1591 = vmatpush1.msra.mxu0 0.0
  %1592 = vmatprep.mubr.f32.mxu0 0.0
  %1593 = vmatmul.mubr.f32.gmra.mrb[0].mxu0 %v1386
  %v1594 = vpop.f32.mrb[0].mxu0
  %v1595 = vadd.f32 %v586, %v1594
  %v1596 = vpop.f32.mrb[0].mxu0
  %1597 = vdwg.mxu0
  %v1598 = vadd.f32 %v178, %v1455
  %v1599 = vxor.u32 %v1598, 2147483648
  %v1600 = vmul.f32 %v1599, 1.442695
  %v1601 = vpow.pop %v1600
  %v1602 = vadd.f32 %v1601, 1.0
  %v1603 = vrcp.pop %v1602
  %v1604 = vmul.f32 1.0, %v1603
  %v1605 = vadd.f32 %v292, %v1525
  %v1606 = vxor.u32 %v1605, 2147483648
  %v1607 = vmul.f32 %v1606, 1.442695
  %v1608 = vpow.pop %v1607
  %v1609 = vadd.f32 %v1608, 1.0
  %v1610 = vrcp.pop %v1609
  %v1611 = vmul.f32 1.0, %v1610
  %v1612 = vmul.f32 %v1604, %v1595
  %v1613 = vadd.f32 %v406, %v1612
  %v1614 = vtanh.pop %v1613
  %v1615 = vsub.f32 1.0, %v1611
  %v1616 = vmul.f32 %v1615, %v1614
  %v1617 = vmul.f32 %v1611, %v1383
  %v1618 = vadd.f32 %v1616, %v1617
  %v1619 = vadd.f32 %v1384, %v1618
  %v1621 = vsel %vm438, %v1618, 0
  %1623 = vmatprep.subr.mxu0 0.0
  %1624 = vmatpush1.msra.mxu0 %v424
  %1625 = vmatprep.subr.mxu0 0.0
  %1626 = vmatpush1.msra.mxu0 %v425
  %1627 = vmatprep.subr.mxu0 0.0
  %1628 = vmatpush1.msra.mxu0 %v426
  %1629 = vmatprep.subr.mxu0 0.0
  %1630 = vmatpush1.msra.mxu0 %v427
  %1631 = vmatprep.subr.mxu0 0.0
  %1632 = vmatpush1.msra.mxu0 0.0
  %1633 = vmatprep.subr.mxu0 0.0
  %1634 = vmatpush1.msra.mxu0 0.0
  %1635 = vmatprep.subr.mxu0 0.0
  %1636 = vmatpush1.msra.mxu0 0.0
  %1637 = vmatprep.subr.mxu0 0.0
  %1638 = vmatpush1.msra.mxu0 0.0
  %1639 = vmatprep.subr.mxu0 0.0
  %1640 = vmatpush1.msra.mxu0 0.0
  %1641 = vmatprep.subr.mxu0 0.0
  %1642 = vmatpush1.msra.mxu0 0.0
  %1643 = vmatprep.subr.mxu0 0.0
  %1644 = vmatpush1.msra.mxu0 0.0
  %1645 = vmatprep.subr.mxu0 0.0
  %1646 = vmatpush1.msra.mxu0 0.0
  %1647 = vmatprep.subr.mxu0 0.0
  %1648 = vmatpush1.msra.mxu0 0.0
  %1649 = vmatprep.subr.mxu0 0.0
  %1650 = vmatpush1.msra.mxu0 0.0
  %1651 = vmatprep.subr.mxu0 0.0
  %1652 = vmatpush1.msra.mxu0 0.0
  %1653 = vmatprep.subr.mxu0 0.0
  %1654 = vmatpush1.msra.mxu0 0.0
  %1655 = vmatprep.subr.mxu0 0.0
  %1656 = vmatpush1.msra.mxu0 0.0
  %1657 = vmatprep.subr.mxu0 0.0
  %1658 = vmatpush1.msra.mxu0 0.0
  %1659 = vmatprep.subr.mxu0 0.0
  %1660 = vmatpush1.msra.mxu0 0.0
  %1661 = vmatprep.subr.mxu0 0.0
  %1662 = vmatpush1.msra.mxu0 0.0
  %1663 = vmatprep.subr.mxu0 0.0
  %1664 = vmatpush1.msra.mxu0 0.0
  %1665 = vmatprep.subr.mxu0 0.0
  %1666 = vmatpush1.msra.mxu0 0.0
  %1667 = vmatprep.subr.mxu0 0.0
  %1668 = vmatpush1.msra.mxu0 0.0
  %1669 = vmatprep.subr.mxu0 0.0
  %1670 = vmatpush1.msra.mxu0 0.0
  %1671 = vmatprep.subr.mxu0 0.0
  %1672 = vmatpush1.msra.mxu0 0.0
  %1673 = vmatprep.subr.mxu0 0.0
  %1674 = vmatpush1.msra.mxu0 0.0
  %1675 = vmatprep.subr.mxu0 0.0
  %1676 = vmatpush1.msra.mxu0 0.0
  %1677 = vmatprep.subr.mxu0 0.0
  %1678 = vmatpush1.msra.mxu0 0.0
  %1679 = vmatprep.subr.mxu0 0.0
  %1680 = vmatpush1.msra.mxu0 0.0
  %1681 = vmatprep.subr.mxu0 0.0
  %1682 = vmatpush1.msra.mxu0 0.0
  %1683 = vmatprep.subr.mxu0 0.0
  %1684 = vmatpush1.msra.mxu0 0.0
  %1685 = vmatprep.subr.mxu0 0.0
  %1686 = vmatpush1.msra.mxu0 0.0
  %1687 = vmatprep.mubr.f32.mxu0 0.0
  %1688 = vmatmul.mubr.f32.gmra.mrb[0].mxu0 %v1621
  %v1689 = vpop.f32.mrb[0].mxu0
  %v1690 = vadd.f32 0.0, %v1689
  %v1691 = vpop.f32.mrb[0].mxu0
  %1692 = vdwg.mxu0
  %1693 = vmatprep.subr.mxu0 0.0
  %1694 = vmatpush1.msra.mxu0 %v428
  %1695 = vmatprep.subr.mxu0 0.0
  %1696 = vmatpush1.msra.mxu0 %v429
  %1697 = vmatprep.subr.mxu0 0.0
  %1698 = vmatpush1.msra.mxu0 %v430
  %1699 = vmatprep.subr.mxu0 0.0
  %1700 = vmatpush1.msra.mxu0 %v431
  %1701 = vmatprep.subr.mxu0 0.0
  %1702 = vmatpush1.msra.mxu0 0.0
  %1703 = vmatprep.subr.mxu0 0.0
  %1704 = vmatpush1.msra.mxu0 0.0
  %1705 = vmatprep.subr.mxu0 0.0
  %1706 = vmatpush1.msra.mxu0 0.0
  %1707 = vmatprep.subr.mxu0 0.0
  %1708 = vmatpush1.msra.mxu0 0.0
  %1709 = vmatprep.subr.mxu0 0.0
  %1710 = vmatpush1.msra.mxu0 0.0
  %1711 = vmatprep.subr.mxu0 0.0
  %1712 = vmatpush1.msra.mxu0 0.0
  %1713 = vmatprep.subr.mxu0 0.0
  %1714 = vmatpush1.msra.mxu0 0.0
  %1715 = vmatprep.subr.mxu0 0.0
  %1716 = vmatpush1.msra.mxu0 0.0
  %1717 = vmatprep.subr.mxu0 0.0
  %1718 = vmatpush1.msra.mxu0 0.0
  %1719 = vmatprep.subr.mxu0 0.0
  %1720 = vmatpush1.msra.mxu0 0.0
  %1721 = vmatprep.subr.mxu0 0.0
  %1722 = vmatpush1.msra.mxu0 0.0
  %1723 = vmatprep.subr.mxu0 0.0
  %1724 = vmatpush1.msra.mxu0 0.0
  %1725 = vmatprep.subr.mxu0 0.0
  %1726 = vmatpush1.msra.mxu0 0.0
  %1727 = vmatprep.subr.mxu0 0.0
  %1728 = vmatpush1.msra.mxu0 0.0
  %1729 = vmatprep.subr.mxu0 0.0
  %1730 = vmatpush1.msra.mxu0 0.0
  %1731 = vmatprep.subr.mxu0 0.0
  %1732 = vmatpush1.msra.mxu0 0.0
  %1733 = vmatprep.subr.mxu0 0.0
  %1734 = vmatpush1.msra.mxu0 0.0
  %1735 = vmatprep.subr.mxu0 0.0
  %1736 = vmatpush1.msra.mxu0 0.0
  %1737 = vmatprep.subr.mxu0 0.0
  %1738 = vmatpush1.msra.mxu0 0.0
  %1739 = vmatprep.subr.mxu0 0.0
  %1740 = vmatpush1.msra.mxu0 0.0
  %1741 = vmatprep.subr.mxu0 0.0
  %1742 = vmatpush1.msra.mxu0 0.0
  %1743 = vmatprep.subr.mxu0 0.0
  %1744 = vmatpush1.msra.mxu0 0.0
  %1745 = vmatprep.subr.mxu0 0.0
  %1746 = vmatpush1.msra.mxu0 0.0
  %1747 = vmatprep.subr.mxu0 0.0
  %1748 = vmatpush1.msra.mxu0 0.0
  %1749 = vmatprep.subr.mxu0 0.0
  %1750 = vmatpush1.msra.mxu0 0.0
  %1751 = vmatprep.subr.mxu0 0.0
  %1752 = vmatpush1.msra.mxu0 0.0
  %1753 = vmatprep.subr.mxu0 0.0
  %1754 = vmatpush1.msra.mxu0 0.0
  %1755 = vmatprep.subr.mxu0 0.0
  %1756 = vmatpush1.msra.mxu0 0.0
  %1757 = vmatprep.mubr.f32.mxu0 0.0
  %1758 = vmatmul.mubr.f32.gmra.mrb[0].mxu0 %v1621
  %v1759 = vpop.f32.mrb[0].mxu0
  %v1760 = vadd.f32 0.0, %v1759
  %v1761 = vpop.f32.mrb[0].mxu0
  %1762 = vdwg.mxu0
  %1763 = vmatprep.subr.mxu0 0.0
  %1764 = vmatpush1.msra.mxu0 %v432
  %1765 = vmatprep.subr.mxu0 0.0
  %1766 = vmatpush1.msra.mxu0 %v433
  %1767 = vmatprep.subr.mxu0 0.0
  %1768 = vmatpush1.msra.mxu0 %v434
  %1769 = vmatprep.subr.mxu0 0.0
  %1770 = vmatpush1.msra.mxu0 %v435
  %1771 = vmatprep.subr.mxu0 0.0
  %1772 = vmatpush1.msra.mxu0 0.0
  %1773 = vmatprep.subr.mxu0 0.0
  %1774 = vmatpush1.msra.mxu0 0.0
  %1775 = vmatprep.subr.mxu0 0.0
  %1776 = vmatpush1.msra.mxu0 0.0
  %1777 = vmatprep.subr.mxu0 0.0
  %1778 = vmatpush1.msra.mxu0 0.0
  %1779 = vmatprep.subr.mxu0 0.0
  %1780 = vmatpush1.msra.mxu0 0.0
  %1781 = vmatprep.subr.mxu0 0.0
  %1782 = vmatpush1.msra.mxu0 0.0
  %1783 = vmatprep.subr.mxu0 0.0
  %1784 = vmatpush1.msra.mxu0 0.0
  %1785 = vmatprep.subr.mxu0 0.0
  %1786 = vmatpush1.msra.mxu0 0.0
  %1787 = vmatprep.subr.mxu0 0.0
  %1788 = vmatpush1.msra.mxu0 0.0
  %1789 = vmatprep.subr.mxu0 0.0
  %1790 = vmatpush1.msra.mxu0 0.0
  %1791 = vmatprep.subr.mxu0 0.0
  %1792 = vmatpush1.msra.mxu0 0.0
  %1793 = vmatprep.subr.mxu0 0.0
  %1794 = vmatpush1.msra.mxu0 0.0
  %1795 = vmatprep.subr.mxu0 0.0
  %1796 = vmatpush1.msra.mxu0 0.0
  %1797 = vmatprep.subr.mxu0 0.0
  %1798 = vmatpush1.msra.mxu0 0.0
  %1799 = vmatprep.subr.mxu0 0.0
  %1800 = vmatpush1.msra.mxu0 0.0
  %1801 = vmatprep.subr.mxu0 0.0
  %1802 = vmatpush1.msra.mxu0 0.0
  %1803 = vmatprep.subr.mxu0 0.0
  %1804 = vmatpush1.msra.mxu0 0.0
  %1805 = vmatprep.subr.mxu0 0.0
  %1806 = vmatpush1.msra.mxu0 0.0
  %1807 = vmatprep.subr.mxu0 0.0
  %1808 = vmatpush1.msra.mxu0 0.0
  %1809 = vmatprep.subr.mxu0 0.0
  %1810 = vmatpush1.msra.mxu0 0.0
  %1811 = vmatprep.subr.mxu0 0.0
  %1812 = vmatpush1.msra.mxu0 0.0
  %1813 = vmatprep.subr.mxu0 0.0
  %1814 = vmatpush1.msra.mxu0 0.0
  %1815 = vmatprep.subr.mxu0 0.0
  %1816 = vmatpush1.msra.mxu0 0.0
  %1817 = vmatprep.subr.mxu0 0.0
  %1818 = vmatpush1.msra.mxu0 0.0
  %1819 = vmatprep.subr.mxu0 0.0
  %1820 = vmatpush1.msra.mxu0 0.0
  %1821 = vmatprep.subr.mxu0 0.0
  %1822 = vmatpush1.msra.mxu0 0.0
  %1823 = vmatprep.subr.mxu0 0.0
  %1824 = vmatpush1.msra.mxu0 0.0
  %1825 = vmatprep.subr.mxu0 0.0
  %1826 = vmatpush1.msra.mxu0 0.0
  %1827 = vmatprep.mubr.f32.mxu0 0.0
  %1828 = vmatmul.mubr.f32.gmra.mrb[0].mxu0 %v1621
  %v1829 = vpop.f32.mrb[0].mxu0
  %v1830 = vadd.f32 %v586, %v1829
  %v1831 = vpop.f32.mrb[0].mxu0
  %1832 = vdwg.mxu0
  %v1833 = vadd.f32 %v183, %v1690
  %v1834 = vxor.u32 %v1833, 2147483648
  %v1835 = vmul.f32 %v1834, 1.442695
  %v1836 = vpow.pop %v1835
  %v1837 = vadd.f32 %v1836, 1.0
  %v1838 = vrcp.pop %v1837
  %v1839 = vmul.f32 1.0, %v1838
  %v1840 = vadd.f32 %v297, %v1760
  %v1841 = vxor.u32 %v1840, 2147483648
  %v1842 = vmul.f32 %v1841, 1.442695
  %v1843 = vpow.pop %v1842
  %v1844 = vadd.f32 %v1843, 1.0
  %v1845 = vrcp.pop %v1844
  %v1846 = vmul.f32 1.0, %v1845
  %v1847 = vmul.f32 %v1839, %v1830
  %v1848 = vadd.f32 %v411, %v1847
  %v1849 = vtanh.pop %v1848
  %v1850 = vsub.f32 1.0, %v1846
  %v1851 = vmul.f32 %v1850, %v1849
  %v1852 = vmul.f32 %v1846, %v1618
  %v1853 = vadd.f32 %v1851, %v1852
  %v1854 = vadd.f32 %v1619, %v1853
  %v1856 = vsel %vm438, %v1853, 0
  %1858 = vmatprep.subr.mxu0 0.0
  %1859 = vmatpush1.msra.mxu0 %v424
  %1860 = vmatprep.subr.mxu0 0.0
  %1861 = vmatpush1.msra.mxu0 %v425
  %1862 = vmatprep.subr.mxu0 0.0
  %1863 = vmatpush1.msra.mxu0 %v426
  %1864 = vmatprep.subr.mxu0 0.0
  %1865 = vmatpush1.msra.mxu0 %v427
  %1866 = vmatprep.subr.mxu0 0.0
  %1867 = vmatpush1.msra.mxu0 0.0
  %1868 = vmatprep.subr.mxu0 0.0
  %1869 = vmatpush1.msra.mxu0 0.0
  %1870 = vmatprep.subr.mxu0 0.0
  %1871 = vmatpush1.msra.mxu0 0.0
  %1872 = vmatprep.subr.mxu0 0.0
  %1873 = vmatpush1.msra.mxu0 0.0
  %1874 = vmatprep.subr.mxu0 0.0
  %1875 = vmatpush1.msra.mxu0 0.0
  %1876 = vmatprep.subr.mxu0 0.0
  %1877 = vmatpush1.msra.mxu0 0.0
  %1878 = vmatprep.subr.mxu0 0.0
  %1879 = vmatpush1.msra.mxu0 0.0
  %1880 = vmatprep.subr.mxu0 0.0
  %1881 = vmatpush1.msra.mxu0 0.0
  %1882 = vmatprep.subr.mxu0 0.0
  %1883 = vmatpush1.msra.mxu0 0.0
  %1884 = vmatprep.subr.mxu0 0.0
  %1885 = vmatpush1.msra.mxu0 0.0
  %1886 = vmatprep.subr.mxu0 0.0
  %1887 = vmatpush1.msra.mxu0 0.0
  %1888 = vmatprep.subr.mxu0 0.0
  %1889 = vmatpush1.msra.mxu0 0.0
  %1890 = vmatprep.subr.mxu0 0.0
  %1891 = vmatpush1.msra.mxu0 0.0
  %1892 = vmatprep.subr.mxu0 0.0
  %1893 = vmatpush1.msra.mxu0 0.0
  %1894 = vmatprep.subr.mxu0 0.0
  %1895 = vmatpush1.msra.mxu0 0.0
  %1896 = vmatprep.subr.mxu0 0.0
  %1897 = vmatpush1.msra.mxu0 0.0
  %1898 = vmatprep.subr.mxu0 0.0
  %1899 = vmatpush1.msra.mxu0 0.0
  %1900 = vmatprep.subr.mxu0 0.0
  %1901 = vmatpush1.msra.mxu0 0.0
  %1902 = vmatprep.subr.mxu0 0.0
  %1903 = vmatpush1.msra.mxu0 0.0
  %1904 = vmatprep.subr.mxu0 0.0
  %1905 = vmatpush1.msra.mxu0 0.0
  %1906 = vmatprep.subr.mxu0 0.0
  %1907 = vmatpush1.msra.mxu0 0.0
  %1908 = vmatprep.subr.mxu0 0.0
  %1909 = vmatpush1.msra.mxu0 0.0
  %1910 = vmatprep.subr.mxu0 0.0
  %1911 = vmatpush1.msra.mxu0 0.0
  %1912 = vmatprep.subr.mxu0 0.0
  %1913 = vmatpush1.msra.mxu0 0.0
  %1914 = vmatprep.subr.mxu0 0.0
  %1915 = vmatpush1.msra.mxu0 0.0
  %1916 = vmatprep.subr.mxu0 0.0
  %1917 = vmatpush1.msra.mxu0 0.0
  %1918 = vmatprep.subr.mxu0 0.0
  %1919 = vmatpush1.msra.mxu0 0.0
  %1920 = vmatprep.subr.mxu0 0.0
  %1921 = vmatpush1.msra.mxu0 0.0
  %1922 = vmatprep.mubr.f32.mxu0 0.0
  %1923 = vmatmul.mubr.f32.gmra.mrb[0].mxu0 %v1856
  %v1924 = vpop.f32.mrb[0].mxu0
  %v1925 = vadd.f32 0.0, %v1924
  %v1926 = vpop.f32.mrb[0].mxu0
  %1927 = vdwg.mxu0
  %1928 = vmatprep.subr.mxu0 0.0
  %1929 = vmatpush1.msra.mxu0 %v428
  %1930 = vmatprep.subr.mxu0 0.0
  %1931 = vmatpush1.msra.mxu0 %v429
  %1932 = vmatprep.subr.mxu0 0.0
  %1933 = vmatpush1.msra.mxu0 %v430
  %1934 = vmatprep.subr.mxu0 0.0
  %1935 = vmatpush1.msra.mxu0 %v431
  %1936 = vmatprep.subr.mxu0 0.0
  %1937 = vmatpush1.msra.mxu0 0.0
  %1938 = vmatprep.subr.mxu0 0.0
  %1939 = vmatpush1.msra.mxu0 0.0
  %1940 = vmatprep.subr.mxu0 0.0
  %1941 = vmatpush1.msra.mxu0 0.0
  %1942 = vmatprep.subr.mxu0 0.0
  %1943 = vmatpush1.msra.mxu0 0.0
  %1944 = vmatprep.subr.mxu0 0.0
  %1945 = vmatpush1.msra.mxu0 0.0
  %1946 = vmatprep.subr.mxu0 0.0
  %1947 = vmatpush1.msra.mxu0 0.0
  %1948 = vmatprep.subr.mxu0 0.0
  %1949 = vmatpush1.msra.mxu0 0.0
  %1950 = vmatprep.subr.mxu0 0.0
  %1951 = vmatpush1.msra.mxu0 0.0
  %1952 = vmatprep.subr.mxu0 0.0
  %1953 = vmatpush1.msra.mxu0 0.0
  %1954 = vmatprep.subr.mxu0 0.0
  %1955 = vmatpush1.msra.mxu0 0.0
  %1956 = vmatprep.subr.mxu0 0.0
  %1957 = vmatpush1.msra.mxu0 0.0
  %1958 = vmatprep.subr.mxu0 0.0
  %1959 = vmatpush1.msra.mxu0 0.0
  %1960 = vmatprep.subr.mxu0 0.0
  %1961 = vmatpush1.msra.mxu0 0.0
  %1962 = vmatprep.subr.mxu0 0.0
  %1963 = vmatpush1.msra.mxu0 0.0
  %1964 = vmatprep.subr.mxu0 0.0
  %1965 = vmatpush1.msra.mxu0 0.0
  %1966 = vmatprep.subr.mxu0 0.0
  %1967 = vmatpush1.msra.mxu0 0.0
  %1968 = vmatprep.subr.mxu0 0.0
  %1969 = vmatpush1.msra.mxu0 0.0
  %1970 = vmatprep.subr.mxu0 0.0
  %1971 = vmatpush1.msra.mxu0 0.0
  %1972 = vmatprep.subr.mxu0 0.0
  %1973 = vmatpush1.msra.mxu0 0.0
  %1974 = vmatprep.subr.mxu0 0.0
  %1975 = vmatpush1.msra.mxu0 0.0
  %1976 = vmatprep.subr.mxu0 0.0
  %1977 = vmatpush1.msra.mxu0 0.0
  %1978 = vmatprep.subr.mxu0 0.0
  %1979 = vmatpush1.msra.mxu0 0.0
  %1980 = vmatprep.subr.mxu0 0.0
  %1981 = vmatpush1.msra.mxu0 0.0
  %1982 = vmatprep.subr.mxu0 0.0
  %1983 = vmatpush1.msra.mxu0 0.0
  %1984 = vmatprep.subr.mxu0 0.0
  %1985 = vmatpush1.msra.mxu0 0.0
  %1986 = vmatprep.subr.mxu0 0.0
  %1987 = vmatpush1.msra.mxu0 0.0
  %1988 = vmatprep.subr.mxu0 0.0
  %1989 = vmatpush1.msra.mxu0 0.0
  %1990 = vmatprep.subr.mxu0 0.0
  %1991 = vmatpush1.msra.mxu0 0.0
  %1992 = vmatprep.mubr.f32.mxu0 0.0
  %1993 = vmatmul.mubr.f32.gmra.mrb[0].mxu0 %v1856
  %v1994 = vpop.f32.mrb[0].mxu0
  %v1995 = vadd.f32 0.0, %v1994
  %v1996 = vpop.f32.mrb[0].mxu0
  %1997 = vdwg.mxu0
  %1998 = vmatprep.subr.mxu0 0.0
  %1999 = vmatpush1.msra.mxu0 %v432
  %2000 = vmatprep.subr.mxu0 0.0
  %2001 = vmatpush1.msra.mxu0 %v433
  %2002 = vmatprep.subr.mxu0 0.0
  %2003 = vmatpush1.msra.mxu0 %v434
  %2004 = vmatprep.subr.mxu0 0.0
  %2005 = vmatpush1.msra.mxu0 %v435
  %2006 = vmatprep.subr.mxu0 0.0
  %2007 = vmatpush1.msra.mxu0 0.0
  %2008 = vmatprep.subr.mxu0 0.0
  %2009 = vmatpush1.msra.mxu0 0.0
  %2010 = vmatprep.subr.mxu0 0.0
  %2011 = vmatpush1.msra.mxu0 0.0
  %2012 = vmatprep.subr.mxu0 0.0
  %2013 = vmatpush1.msra.mxu0 0.0
  %2014 = vmatprep.subr.mxu0 0.0
  %2015 = vmatpush1.msra.mxu0 0.0
  %2016 = vmatprep.subr.mxu0 0.0
  %2017 = vmatpush1.msra.mxu0 0.0
  %2018 = vmatprep.subr.mxu0 0.0
  %2019 = vmatpush1.msra.mxu0 0.0
  %2020 = vmatprep.subr.mxu0 0.0
  %2021 = vmatpush1.msra.mxu0 0.0
  %2022 = vmatprep.subr.mxu0 0.0
  %2023 = vmatpush1.msra.mxu0 0.0
  %2024 = vmatprep.subr.mxu0 0.0
  %2025 = vmatpush1.msra.mxu0 0.0
  %2026 = vmatprep.subr.mxu0 0.0
  %2027 = vmatpush1.msra.mxu0 0.0
  %2028 = vmatprep.subr.mxu0 0.0
  %2029 = vmatpush1.msra.mxu0 0.0
  %2030 = vmatprep.subr.mxu0 0.0
  %2031 = vmatpush1.msra.mxu0 0.0
  %2032 = vmatprep.subr.mxu0 0.0
  %2033 = vmatpush1.msra.mxu0 0.0
  %2034 = vmatprep.subr.mxu0 0.0
  %2035 = vmatpush1.msra.mxu0 0.0
  %2036 = vmatprep.subr.mxu0 0.0
  %2037 = vmatpush1.msra.mxu0 0.0
  %2038 = vmatprep.subr.mxu0 0.0
  %2039 = vmatpush1.msra.mxu0 0.0
  %2040 = vmatprep.subr.mxu0 0.0
  %2041 = vmatpush1.msra.mxu0 0.0
  %2042 = vmatprep.subr.mxu0 0.0
  %2043 = vmatpush1.msra.mxu0 0.0
  %2044 = vmatprep.subr.mxu0 0.0
  %2045 = vmatpush1.msra.mxu0 0.0
  %2046 = vmatprep.subr.mxu0 0.0
  %2047 = vmatpush1.msra.mxu0 0.0
  %2048 = vmatprep.subr.mxu0 0.0
  %2049 = vmatpush1.msra.mxu0 0.0
  %2050 = vmatprep.subr.mxu0 0.0
  %2051 = vmatpush1.msra.mxu0 0.0
  %2052 = vmatprep.subr.mxu0 0.0
  %2053 = vmatpush1.msra.mxu0 0.0
  %2054 = vmatprep.subr.mxu0 0.0
  %2055 = vmatpush1.msra.mxu0 0.0
  %2056 = vmatprep.subr.mxu0 0.0
  %2057 = vmatpush1.msra.mxu0 0.0
  %2058 = vmatprep.subr.mxu0 0.0
  %2059 = vmatpush1.msra.mxu0 0.0
  %2060 = vmatprep.subr.mxu0 0.0
  %2061 = vmatpush1.msra.mxu0 0.0
  %2062 = vmatprep.mubr.f32.mxu0 0.0
  %2063 = vmatmul.mubr.f32.gmra.mrb[0].mxu0 %v1856
  %v2064 = vpop.f32.mrb[0].mxu0
  %v2065 = vadd.f32 %v586, %v2064
  %v2066 = vpop.f32.mrb[0].mxu0
  %2067 = vdwg.mxu0
  %v2068 = vadd.f32 %v188, %v1925
  %v2069 = vxor.u32 %v2068, 2147483648
  %v2070 = vmul.f32 %v2069, 1.442695
  %v2071 = vpow.pop %v2070
  %v2072 = vadd.f32 %v2071, 1.0
  %v2073 = vrcp.pop %v2072
  %v2074 = vmul.f32 1.0, %v2073
  %v2075 = vadd.f32 %v302, %v1995
  %v2076 = vxor.u32 %v2075, 2147483648
  %v2077 = vmul.f32 %v2076, 1.442695
  %v2078 = vpow.pop %v2077
  %v2079 = vadd.f32 %v2078, 1.0
  %v2080 = vrcp.pop %v2079
  %v2081 = vmul.f32 1.0, %v2080
  %v2082 = vmul.f32 %v2074, %v2065
  %v2083 = vadd.f32 %v416, %v2082
  %v2084 = vtanh.pop %v2083
  %v2085 = vsub.f32 1.0, %v2081
  %v2086 = vmul.f32 %v2085, %v2084
  %v2087 = vmul.f32 %v2081, %v1853
  %v2088 = vadd.f32 %v2086, %v2087
  %v2089 = vadd.f32 %v1854, %v2088
  %v2091 = vsel %vm438, %v2088, 0
  %2093 = vmatprep.subr.mxu0 0.0
  %2094 = vmatpush1.msra.mxu0 %v424
  %2095 = vmatprep.subr.mxu0 0.0
  %2096 = vmatpush1.msra.mxu0 %v425
  %2097 = vmatprep.subr.mxu0 0.0
  %2098 = vmatpush1.msra.mxu0 %v426
  %2099 = vmatprep.subr.mxu0 0.0
  %2100 = vmatpush1.msra.mxu0 %v427
  %2101 = vmatprep.subr.mxu0 0.0
  %2102 = vmatpush1.msra.mxu0 0.0
  %2103 = vmatprep.subr.mxu0 0.0
  %2104 = vmatpush1.msra.mxu0 0.0
  %2105 = vmatprep.subr.mxu0 0.0
  %2106 = vmatpush1.msra.mxu0 0.0
  %2107 = vmatprep.subr.mxu0 0.0
  %2108 = vmatpush1.msra.mxu0 0.0
  %2109 = vmatprep.subr.mxu0 0.0
  %2110 = vmatpush1.msra.mxu0 0.0
  %2111 = vmatprep.subr.mxu0 0.0
  %2112 = vmatpush1.msra.mxu0 0.0
  %2113 = vmatprep.subr.mxu0 0.0
  %2114 = vmatpush1.msra.mxu0 0.0
  %2115 = vmatprep.subr.mxu0 0.0
  %2116 = vmatpush1.msra.mxu0 0.0
  %2117 = vmatprep.subr.mxu0 0.0
  %2118 = vmatpush1.msra.mxu0 0.0
  %2119 = vmatprep.subr.mxu0 0.0
  %2120 = vmatpush1.msra.mxu0 0.0
  %2121 = vmatprep.subr.mxu0 0.0
  %2122 = vmatpush1.msra.mxu0 0.0
  %2123 = vmatprep.subr.mxu0 0.0
  %2124 = vmatpush1.msra.mxu0 0.0
  %2125 = vmatprep.subr.mxu0 0.0
  %2126 = vmatpush1.msra.mxu0 0.0
  %2127 = vmatprep.subr.mxu0 0.0
  %2128 = vmatpush1.msra.mxu0 0.0
  %2129 = vmatprep.subr.mxu0 0.0
  %2130 = vmatpush1.msra.mxu0 0.0
  %2131 = vmatprep.subr.mxu0 0.0
  %2132 = vmatpush1.msra.mxu0 0.0
  %2133 = vmatprep.subr.mxu0 0.0
  %2134 = vmatpush1.msra.mxu0 0.0
  %2135 = vmatprep.subr.mxu0 0.0
  %2136 = vmatpush1.msra.mxu0 0.0
  %2137 = vmatprep.subr.mxu0 0.0
  %2138 = vmatpush1.msra.mxu0 0.0
  %2139 = vmatprep.subr.mxu0 0.0
  %2140 = vmatpush1.msra.mxu0 0.0
  %2141 = vmatprep.subr.mxu0 0.0
  %2142 = vmatpush1.msra.mxu0 0.0
  %2143 = vmatprep.subr.mxu0 0.0
  %2144 = vmatpush1.msra.mxu0 0.0
  %2145 = vmatprep.subr.mxu0 0.0
  %2146 = vmatpush1.msra.mxu0 0.0
  %2147 = vmatprep.subr.mxu0 0.0
  %2148 = vmatpush1.msra.mxu0 0.0
  %2149 = vmatprep.subr.mxu0 0.0
  %2150 = vmatpush1.msra.mxu0 0.0
  %2151 = vmatprep.subr.mxu0 0.0
  %2152 = vmatpush1.msra.mxu0 0.0
  %2153 = vmatprep.subr.mxu0 0.0
  %2154 = vmatpush1.msra.mxu0 0.0
  %2155 = vmatprep.subr.mxu0 0.0
  %2156 = vmatpush1.msra.mxu0 0.0
  %2157 = vmatprep.mubr.f32.mxu0 0.0
  %2158 = vmatmul.mubr.f32.gmra.mrb[0].mxu0 %v2091
  %v2159 = vpop.f32.mrb[0].mxu0
  %v2160 = vadd.f32 0.0, %v2159
  %v2161 = vpop.f32.mrb[0].mxu0
  %2162 = vdwg.mxu0
  %2163 = vmatprep.subr.mxu0 0.0
  %2164 = vmatpush1.msra.mxu0 %v428
  %2165 = vmatprep.subr.mxu0 0.0
  %2166 = vmatpush1.msra.mxu0 %v429
  %2167 = vmatprep.subr.mxu0 0.0
  %2168 = vmatpush1.msra.mxu0 %v430
  %2169 = vmatprep.subr.mxu0 0.0
  %2170 = vmatpush1.msra.mxu0 %v431
  %2171 = vmatprep.subr.mxu0 0.0
  %2172 = vmatpush1.msra.mxu0 0.0
  %2173 = vmatprep.subr.mxu0 0.0
  %2174 = vmatpush1.msra.mxu0 0.0
  %2175 = vmatprep.subr.mxu0 0.0
  %2176 = vmatpush1.msra.mxu0 0.0
  %2177 = vmatprep.subr.mxu0 0.0
  %2178 = vmatpush1.msra.mxu0 0.0
  %2179 = vmatprep.subr.mxu0 0.0
  %2180 = vmatpush1.msra.mxu0 0.0
  %2181 = vmatprep.subr.mxu0 0.0
  %2182 = vmatpush1.msra.mxu0 0.0
  %2183 = vmatprep.subr.mxu0 0.0
  %2184 = vmatpush1.msra.mxu0 0.0
  %2185 = vmatprep.subr.mxu0 0.0
  %2186 = vmatpush1.msra.mxu0 0.0
  %2187 = vmatprep.subr.mxu0 0.0
  %2188 = vmatpush1.msra.mxu0 0.0
  %2189 = vmatprep.subr.mxu0 0.0
  %2190 = vmatpush1.msra.mxu0 0.0
  %2191 = vmatprep.subr.mxu0 0.0
  %2192 = vmatpush1.msra.mxu0 0.0
  %2193 = vmatprep.subr.mxu0 0.0
  %2194 = vmatpush1.msra.mxu0 0.0
  %2195 = vmatprep.subr.mxu0 0.0
  %2196 = vmatpush1.msra.mxu0 0.0
  %2197 = vmatprep.subr.mxu0 0.0
  %2198 = vmatpush1.msra.mxu0 0.0
  %2199 = vmatprep.subr.mxu0 0.0
  %2200 = vmatpush1.msra.mxu0 0.0
  %2201 = vmatprep.subr.mxu0 0.0
  %2202 = vmatpush1.msra.mxu0 0.0
  %2203 = vmatprep.subr.mxu0 0.0
  %2204 = vmatpush1.msra.mxu0 0.0
  %2205 = vmatprep.subr.mxu0 0.0
  %2206 = vmatpush1.msra.mxu0 0.0
  %2207 = vmatprep.subr.mxu0 0.0
  %2208 = vmatpush1.msra.mxu0 0.0
  %2209 = vmatprep.subr.mxu0 0.0
  %2210 = vmatpush1.msra.mxu0 0.0
  %2211 = vmatprep.subr.mxu0 0.0
  %2212 = vmatpush1.msra.mxu0 0.0
  %2213 = vmatprep.subr.mxu0 0.0
  %2214 = vmatpush1.msra.mxu0 0.0
  %2215 = vmatprep.subr.mxu0 0.0
  %2216 = vmatpush1.msra.mxu0 0.0
  %2217 = vmatprep.subr.mxu0 0.0
  %2218 = vmatpush1.msra.mxu0 0.0
  %2219 = vmatprep.subr.mxu0 0.0
  %2220 = vmatpush1.msra.mxu0 0.0
  %2221 = vmatprep.subr.mxu0 0.0
  %2222 = vmatpush1.msra.mxu0 0.0
  %2223 = vmatprep.subr.mxu0 0.0
  %2224 = vmatpush1.msra.mxu0 0.0
  %2225 = vmatprep.subr.mxu0 0.0
  %2226 = vmatpush1.msra.mxu0 0.0
  %2227 = vmatprep.mubr.f32.mxu0 0.0
  %2228 = vmatmul.mubr.f32.gmra.mrb[0].mxu0 %v2091
  %v2229 = vpop.f32.mrb[0].mxu0
  %v2230 = vadd.f32 0.0, %v2229
  %v2231 = vpop.f32.mrb[0].mxu0
  %2232 = vdwg.mxu0
  %2233 = vmatprep.subr.mxu0 0.0
  %2234 = vmatpush1.msra.mxu0 %v432
  %2235 = vmatprep.subr.mxu0 0.0
  %2236 = vmatpush1.msra.mxu0 %v433
  %2237 = vmatprep.subr.mxu0 0.0
  %2238 = vmatpush1.msra.mxu0 %v434
  %2239 = vmatprep.subr.mxu0 0.0
  %2240 = vmatpush1.msra.mxu0 %v435
  %2241 = vmatprep.subr.mxu0 0.0
  %2242 = vmatpush1.msra.mxu0 0.0
  %2243 = vmatprep.subr.mxu0 0.0
  %2244 = vmatpush1.msra.mxu0 0.0
  %2245 = vmatprep.subr.mxu0 0.0
  %2246 = vmatpush1.msra.mxu0 0.0
  %2247 = vmatprep.subr.mxu0 0.0
  %2248 = vmatpush1.msra.mxu0 0.0
  %2249 = vmatprep.subr.mxu0 0.0
  %2250 = vmatpush1.msra.mxu0 0.0
  %2251 = vmatprep.subr.mxu0 0.0
  %2252 = vmatpush1.msra.mxu0 0.0
  %2253 = vmatprep.subr.mxu0 0.0
  %2254 = vmatpush1.msra.mxu0 0.0
  %2255 = vmatprep.subr.mxu0 0.0
  %2256 = vmatpush1.msra.mxu0 0.0
  %2257 = vmatprep.subr.mxu0 0.0
  %2258 = vmatpush1.msra.mxu0 0.0
  %2259 = vmatprep.subr.mxu0 0.0
  %2260 = vmatpush1.msra.mxu0 0.0
  %2261 = vmatprep.subr.mxu0 0.0
  %2262 = vmatpush1.msra.mxu0 0.0
  %2263 = vmatprep.subr.mxu0 0.0
  %2264 = vmatpush1.msra.mxu0 0.0
  %2265 = vmatprep.subr.mxu0 0.0
  %2266 = vmatpush1.msra.mxu0 0.0
  %2267 = vmatprep.subr.mxu0 0.0
  %2268 = vmatpush1.msra.mxu0 0.0
  %2269 = vmatprep.subr.mxu0 0.0
  %2270 = vmatpush1.msra.mxu0 0.0
  %2271 = vmatprep.subr.mxu0 0.0
  %2272 = vmatpush1.msra.mxu0 0.0
  %2273 = vmatprep.subr.mxu0 0.0
  %2274 = vmatpush1.msra.mxu0 0.0
  %2275 = vmatprep.subr.mxu0 0.0
  %2276 = vmatpush1.msra.mxu0 0.0
  %2277 = vmatprep.subr.mxu0 0.0
  %2278 = vmatpush1.msra.mxu0 0.0
  %2279 = vmatprep.subr.mxu0 0.0
  %2280 = vmatpush1.msra.mxu0 0.0
  %2281 = vmatprep.subr.mxu0 0.0
  %2282 = vmatpush1.msra.mxu0 0.0
  %2283 = vmatprep.subr.mxu0 0.0
  %2284 = vmatpush1.msra.mxu0 0.0
  %2285 = vmatprep.subr.mxu0 0.0
  %2286 = vmatpush1.msra.mxu0 0.0
  %2287 = vmatprep.subr.mxu0 0.0
  %2288 = vmatpush1.msra.mxu0 0.0
  %2289 = vmatprep.subr.mxu0 0.0
  %2290 = vmatpush1.msra.mxu0 0.0
  %2291 = vmatprep.subr.mxu0 0.0
  %2292 = vmatpush1.msra.mxu0 0.0
  %2293 = vmatprep.subr.mxu0 0.0
  %2294 = vmatpush1.msra.mxu0 0.0
  %2295 = vmatprep.subr.mxu0 0.0
  %2296 = vmatpush1.msra.mxu0 0.0
  %2297 = vmatprep.mubr.f32.mxu0 0.0
  %2298 = vmatmul.mubr.f32.gmra.mrb[0].mxu0 %v2091
  %v2299 = vpop.f32.mrb[0].mxu0
  %v2300 = vadd.f32 %v586, %v2299
  %v2301 = vpop.f32.mrb[0].mxu0
  %2302 = vdwg.mxu0
  %v2303 = vadd.f32 %v193, %v2160
  %v2304 = vxor.u32 %v2303, 2147483648
  %v2305 = vmul.f32 %v2304, 1.442695
  %v2306 = vpow.pop %v2305
  %v2307 = vadd.f32 %v2306, 1.0
  %v2308 = vrcp.pop %v2307
  %v2309 = vmul.f32 1.0, %v2308
  %v2310 = vadd.f32 %v307, %v2230
  %v2311 = vxor.u32 %v2310, 2147483648
  %v2312 = vmul.f32 %v2311, 1.442695
  %v2313 = vpow.pop %v2312
  %v2314 = vadd.f32 %v2313, 1.0
  %v2315 = vrcp.pop %v2314
  %v2316 = vmul.f32 1.0, %v2315
  %v2317 = vmul.f32 %v2309, %v2300
  %v2318 = vadd.f32 %v421, %v2317
  %v2319 = vtanh.pop %v2318
  %v2320 = vsub.f32 1.0, %v2316
  %v2321 = vmul.f32 %v2320, %v2319
  %v2322 = vmul.f32 %v2316, %v2088
  %v2323 = vadd.f32 %v2321, %v2322
  %v2324 = vadd.f32 %v2089, %v2323
  %v2325 = vmul.f32 %v2324, 0.125
  %v2326 = vmax.f32 %v2325, 0.0
  %v2327 = vld [vmem:[%s12] sm:$0xff]
  %v2328 = vld [vmem:[%s12 + $0x8] sm:$0xff]
  %v2329 = vld [vmem:[%s12 + $0x10] sm:$0xff]
  %v2330 = vld [vmem:[%s12 + $0x18] sm:$0xff]
  %v2331 = vld [vmem:[%s13] sm:$0x1]
  %v2333 = vlaneseq
  %v2334 = vshrl.u32 %v2333, 7
  %v2335 = vsub.s32 0, %v2334
  %v2336 = vrot.slane %v2331, %v2335
  %v2339 = vsel %vm438, %v2326, 0
  %2341 = vmatprep.subr.mxu0 0.0
  %2342 = vmatpush1.msra.mxu0 %v2327
  %2343 = vmatprep.subr.mxu0 0.0
  %2344 = vmatpush1.msra.mxu0 %v2328
  %2345 = vmatprep.subr.mxu0 0.0
  %2346 = vmatpush1.msra.mxu0 %v2329
  %2347 = vmatprep.subr.mxu0 0.0
  %2348 = vmatpush1.msra.mxu0 %v2330
  %2349 = vmatprep.subr.mxu0 0.0
  %2350 = vmatpush1.msra.mxu0 0.0
  %2351 = vmatprep.subr.mxu0 0.0
  %2352 = vmatpush1.msra.mxu0 0.0
  %2353 = vmatprep.subr.mxu0 0.0
  %2354 = vmatpush1.msra.mxu0 0.0
  %2355 = vmatprep.subr.mxu0 0.0
  %2356 = vmatpush1.msra.mxu0 0.0
  %2357 = vmatprep.subr.mxu0 0.0
  %2358 = vmatpush1.msra.mxu0 0.0
  %2359 = vmatprep.subr.mxu0 0.0
  %2360 = vmatpush1.msra.mxu0 0.0
  %2361 = vmatprep.subr.mxu0 0.0
  %2362 = vmatpush1.msra.mxu0 0.0
  %2363 = vmatprep.subr.mxu0 0.0
  %2364 = vmatpush1.msra.mxu0 0.0
  %2365 = vmatprep.subr.mxu0 0.0
  %2366 = vmatpush1.msra.mxu0 0.0
  %2367 = vmatprep.subr.mxu0 0.0
  %2368 = vmatpush1.msra.mxu0 0.0
  %2369 = vmatprep.subr.mxu0 0.0
  %2370 = vmatpush1.msra.mxu0 0.0
  %2371 = vmatprep.subr.mxu0 0.0
  %2372 = vmatpush1.msra.mxu0 0.0
  %2373 = vmatprep.subr.mxu0 0.0
  %2374 = vmatpush1.msra.mxu0 0.0
  %2375 = vmatprep.subr.mxu0 0.0
  %2376 = vmatpush1.msra.mxu0 0.0
  %2377 = vmatprep.subr.mxu0 0.0
  %2378 = vmatpush1.msra.mxu0 0.0
  %2379 = vmatprep.subr.mxu0 0.0
  %2380 = vmatpush1.msra.mxu0 0.0
  %2381 = vmatprep.subr.mxu0 0.0
  %2382 = vmatpush1.msra.mxu0 0.0
  %2383 = vmatprep.subr.mxu0 0.0
  %2384 = vmatpush1.msra.mxu0 0.0
  %2385 = vmatprep.subr.mxu0 0.0
  %2386 = vmatpush1.msra.mxu0 0.0
  %2387 = vmatprep.subr.mxu0 0.0
  %2388 = vmatpush1.msra.mxu0 0.0
  %2389 = vmatprep.subr.mxu0 0.0
  %2390 = vmatpush1.msra.mxu0 0.0
  %2391 = vmatprep.subr.mxu0 0.0
  %2392 = vmatpush1.msra.mxu0 0.0
  %2393 = vmatprep.subr.mxu0 0.0
  %2394 = vmatpush1.msra.mxu0 0.0
  %2395 = vmatprep.subr.mxu0 0.0
  %2396 = vmatpush1.msra.mxu0 0.0
  %2397 = vmatprep.subr.mxu0 0.0
  %2398 = vmatpush1.msra.mxu0 0.0
  %2399 = vmatprep.subr.mxu0 0.0
  %2400 = vmatpush1.msra.mxu0 0.0
  %2401 = vmatprep.subr.mxu0 0.0
  %2402 = vmatpush1.msra.mxu0 0.0
  %2403 = vmatprep.subr.mxu0 0.0
  %2404 = vmatpush1.msra.mxu0 0.0
  %2405 = vmatprep.mubr.f32.mxu0 0.0
  %2406 = vmatmul.mubr.f32.gmra.mrb[0].mxu0 %v2339
  %v2407 = vpop.f32.mrb[0].mxu0
  %v2408 = vadd.f32 %v2336, %v2407
  %v2409 = vpop.f32.mrb[0].mxu0
  %2410 = vdwg.mxu0
  %vm2411 = vcmask 31744
  %2412 = vst.msk [vmem:[%s14] sm:$0xff] %vm2411, %v2408
  %2413 = vst.msk [vmem:[%s15] sm:$0xff] %vm438, %v2323
  // Predicated region
  $region58: #{classifier_forward.1} parent=0 // pred_check
    _
  $region59: #{classifier_forward.1} parent=0 // pred_check_branch
    %2415 = sbr.rel (0) target = $region61
  $region60: #{classifier_forward.1} parent=0 // pred_region
    _
  $region61: #{classifier_forward.1} parent=0 // pred_fallthru
    _
  // Predicated region
  $region62: #{classifier_forward.1} parent=0 // pred_check
    _
  $region63: #{classifier_forward.1} parent=0 // pred_check_branch
    %2417 = sbr.rel (0) target = $region65
  $region64: #{classifier_forward.1} parent=0 // pred_region
    _
  $region65: #{classifier_forward.1} parent=0 // pred_fallthru
    _
  // Predicated region
  $region66: #{classifier_forward.1} parent=0 // pred_check
    _
  $region67: #{classifier_forward.1} parent=0 // pred_check_branch
    %2419 = sbr.rel (0) target = $region69
  $region68: #{classifier_forward.1} parent=0 // pred_region
    _
  $region69: #{classifier_forward.1} parent=0 // pred_fallthru
    _
  // Predicated region
  $region70: #{classifier_forward.1} parent=0 // pred_check
    _
  $region71: #{classifier_forward.1} parent=0 // pred_check_branch
    %2421 = sbr.rel (0) target = $region73
  $region72: #{classifier_forward.1} parent=0 // pred_region
    _
  $region73: #{classifier_forward.1} parent=0 // pred_fallthru
    _

</llo_original>
